<compile_context>
chip_gen: v5e
topology: v5e:2x2
jax: 0.10.0
libtpu: 0.0.40
codegen_flags: <defaults>
</compile_context>

<pallas_src>
import jax
import jax.numpy as jnp
from jax.experimental import pallas as pl
from jax.experimental.pallas import tpu as pltpu


def down_kernel(x_ref, wa_ref, wb_ref, b_ref, o_ref):
    """One grid step = one image.

    x_ref : (1, H_pad, 2*Cin, W_half)  padded input; width folded into
            (col-pair, parity) with parity merged into the channel axis.
    wa_ref: (3, Cout, 2*Cin)   weights for kw=0 (parity 0) and kw=1 (parity 1)
    wb_ref: (3, Cout, Cin)     weights for kw=2 (parity 0 of the next col-pair)
    b_ref : (Cout, 1)
    o_ref : (1, Cout, H_out, W_out)    NCHW output, written directly in place
    """
    _, cout, h_out, w_out = o_ref.shape
    cin = wb_ref.shape[2]
    bias = b_ref[...]                                    # (Cout, 1)

    # Static unroll over output rows (small here).
    # TODO(synk): for large images, tile the grid over output-row bands
    # (halo = 1 input row) instead of unrolling the whole image.
    for oh in range(h_out):
        acc = jnp.zeros((cout, w_out), jnp.float32)
        for kh in range(3):
            row = x_ref[0, 2 * oh + kh]                  # (2*Cin, W_half)
            ra = row[:, :w_out]                          # kw=0,1 taps  (2*Cin, W_out)
            rb = row[:cin, 1:1 + w_out]                  # kw=2 tap     (Cin,  W_out)
            # K is tiny (2*Cin / Cin); these land as small MXU/VPU dots — the
            # op is memory-bound, so this is not the limiter at these shapes.
            acc = acc + jnp.dot(wa_ref[kh], ra,
                                preferred_element_type=jnp.float32)
            acc = acc + jnp.dot(wb_ref[kh], rb,
                                preferred_element_type=jnp.float32)
        y = acc + bias
        # ELU (alpha = 1), exp argument clamped so positives never hit inf.
        o_ref[0, :, oh, :] = jnp.where(
            y > 0, y, jnp.exp(jnp.minimum(y, 0.0)) - 1.0).astype(o_ref.dtype)


def down_forward(x_nchw, weight, bias):
    """Conv2d(Cin, Cout, kernel_size=3, stride=2, padding=1) + ELU.

    x_nchw : (N, Cin, H, W)          float32
    weight : (Cout, Cin, 3, 3)       float32   (PyTorch Conv2d weight layout)
    bias   : (Cout,)                 float32
    returns: (N, Cout, ceil(H/2), ceil(W/2))  float32, NCHW
    """
    N, Cin, H, W = x_nchw.shape
    Cout = weight.shape[0]
    H_out = (H - 1) // 2 + 1
    W_out = (W - 1) // 2 + 1
    H_pad = H + 2
    w_extra = W % 2                      # make padded width even (splits into pairs)
    W_half = (W + 2 + w_extra) // 2      # == W_out + 1

    # --- input relayout: the ONLY materializing wrapper pass -----------------
    # (N,Cin,H,W) -pad-> (N,Cin,H+2,W+2[+1]) -free-> (N,Cin,H_pad,W_half,2)
    # -transpose-> (N,H_pad,2,Cin,W_half) -free-> (N,H_pad,2*Cin,W_half)
    x_p = jnp.pad(x_nchw, ((0, 0), (0, 0), (1, 1), (1, 1 + w_extra)))
    x_q = x_p.reshape(N, Cin, H_pad, W_half, 2)
    x_t = jnp.transpose(x_q, (0, 2, 4, 1, 3)).reshape(N, H_pad, 2 * Cin, W_half)

    # --- weights: (Cout, Cin, 3, 3) -> per-kh matrices (tiny, one-time) -------
    # wa[kh, co, dw*Cin + ci] = weight[co, ci, kh, dw]   for dw in {0, 1}
    # wb[kh, co, ci]          = weight[co, ci, kh, 2]
    wa = jnp.transpose(
        jnp.concatenate([weight[:, :, :, 0], weight[:, :, :, 1]], axis=1),
        (2, 0, 1))                                        # (3, Cout, 2*Cin)
    wb = jnp.transpose(weight[:, :, :, 2], (2, 0, 1))     # (3, Cout, Cin)
    b2 = bias.reshape(Cout, 1)

    return pl.pallas_call(
        down_kernel,
        out_shape=jax.ShapeDtypeStruct((N, Cout, H_out, W_out), jnp.float32),
        grid=(N,),
        in_specs=[
            pl.BlockSpec((1, H_pad, 2 * Cin, W_half), lambda n: (n, 0, 0, 0)),
            pl.BlockSpec((3, Cout, 2 * Cin), lambda n: (0, 0, 0)),
            pl.BlockSpec((3, Cout, Cin), lambda n: (0, 0, 0)),
            pl.BlockSpec((Cout, 1), lambda n: (0, 0)),
        ],
        out_specs=pl.BlockSpec((1, Cout, H_out, W_out), lambda n: (n, 0, 0, 0)),
        compiler_params=pltpu.CompilerParams(
            dimension_semantics=("parallel",),      # shard images across TCs (v7x)
            vmem_limit_bytes=32 * 1024 * 1024,      # safe on v5e/v6e (128 MiB) and v7x (64 MiB)
        ),
    )(x_t, wa, wb, b2)


def down_reference(x_nchw, weight, bias):
    """Pure-JAX reference of Conv2d(k=3, s=2, p=1) + ELU for verification."""
    y = jax.lax.conv_general_dilated(
        x_nchw, weight, window_strides=(2, 2), padding=((1, 1), (1, 1)),
        dimension_numbers=('NCHW', 'OIHW', 'NCHW'))
    y = y + bias[None, :, None, None]
    return jnp.where(y > 0, y, jnp.exp(jnp.minimum(y, 0.0)) - 1.0)


if __name__ == "__main__":
    key = jax.random.PRNGKey(0)
    k1, k2, k3 = jax.random.split(key, 3)

    N, Cin, Cout, H, W = 2, 4, 8, 16, 16
    x = jax.random.normal(k1, (N, Cin, H, W), dtype=jnp.float32)
    # PyTorch Conv2d weight layout: (Cout, Cin, 3, 3)
    weight = 0.1 * jax.random.normal(k2, (Cout, Cin, 3, 3), dtype=jnp.float32)
    bias = 0.1 * jax.random.normal(k3, (Cout,), dtype=jnp.float32)

    out = jax.block_until_ready(down_forward(x, weight, bias))
    ref = jax.block_until_ready(down_reference(x, weight, bias))

    assert out.shape == (N, Cout, H // 2, W // 2), out.shape
    assert jnp.allclose(out, ref, atol=1e-4, rtol=1e-4), \
        float(jnp.max(jnp.abs(out - ref)))

    print("KERNEL_OK")
</pallas_src>

<mosaic_0001>
module attributes {stable_mosaic.version = 11 : i64} {
  func.func @down_kernel(%arg0: i32, %arg1: memref<1x18x8x9xf32, #tpu.memory_space<vmem>>, %arg2: memref<3x8x8xf32, #tpu.memory_space<vmem>>, %arg3: memref<3x8x4xf32, #tpu.memory_space<vmem>>, %arg4: memref<8x1xf32, #tpu.memory_space<vmem>>, %arg5: memref<1x8x8x8xf32, #tpu.memory_space<vmem>>) attributes {dimension_semantics = [#tpu.dimension_semantics<parallel>], iteration_bounds = array<i64: 2>, scalar_prefetch = 0 : i64, scratch_operands = 0 : i64, tpu.core_type = #tpu.core_type<tc>, window_params = [{transform_indices = @transform_0, window_bounds = array<i64: 1, 18, 8, 9>}, {pipeline_mode = #tpu.pipeline_mode<synchronous>, transform_indices = @transform_1, window_bounds = array<i64: 3, 8, 8>}, {pipeline_mode = #tpu.pipeline_mode<synchronous>, transform_indices = @transform_2, window_bounds = array<i64: 3, 8, 4>}, {pipeline_mode = #tpu.pipeline_mode<synchronous>, transform_indices = @transform_3, window_bounds = array<i64: 8, 1>}, {transform_indices = @transform_4, window_bounds = array<i64: 1, 8, 8, 8>}]} {
    %c0 = arith.constant 0 : index
    %c0_0 = arith.constant 0 : index
    %0 = vector.load %arg4[%c0, %c0_0] : memref<8x1xf32, #tpu.memory_space<vmem>>, vector<8x1xf32>
    %cst = arith.constant 0.000000e+00 : f32
    %1 = vector.broadcast %cst : f32 to vector<8x8xf32>
    %c0_1 = arith.constant 0 : index
    %c0_2 = arith.constant 0 : index
    %c0_3 = arith.constant 0 : index
    %c0_4 = arith.constant 0 : index
    %2 = vector.load %arg1[%c0_1, %c0_2, %c0_3, %c0_4] : memref<1x18x8x9xf32, #tpu.memory_space<vmem>>, vector<1x1x8x9xf32>
    %3 = vector.shape_cast %2 : vector<1x1x8x9xf32> to vector<8x9xf32>
    %4 = vector.extract_strided_slice %3 {offsets = [0, 0], sizes = [8, 8], strides = [1, 1]} : vector<8x9xf32> to vector<8x8xf32>
    %5 = vector.extract_strided_slice %3 {offsets = [0, 1], sizes = [4, 8], strides = [1, 1]} : vector<8x9xf32> to vector<4x8xf32>
    %c0_5 = arith.constant 0 : index
    %c0_6 = arith.constant 0 : index
    %c0_7 = arith.constant 0 : index
    %6 = vector.load %arg2[%c0_5, %c0_6, %c0_7] : memref<3x8x8xf32, #tpu.memory_space<vmem>>, vector<1x8x8xf32>
    %7 = vector.shape_cast %6 : vector<1x8x8xf32> to vector<8x8xf32>
    %cst_8 = arith.constant dense<0.000000e+00> : vector<8x8xf32>
    %8 = tpu.matmul %7, %4, %cst_8 {dimension_numbers = #tpu.dot_dimension_numbers<[1], [0], [0], [1], [0, 0, 1, 1], [], []>} : vector<8x8xf32>, vector<8x8xf32>, vector<8x8xf32> -> vector<8x8xf32>
    %9 = arith.addf %1, %8 : vector<8x8xf32>
    %c0_9 = arith.constant 0 : index
    %c0_10 = arith.constant 0 : index
    %c0_11 = arith.constant 0 : index
    %10 = vector.load %arg3[%c0_9, %c0_10, %c0_11] : memref<3x8x4xf32, #tpu.memory_space<vmem>>, vector<1x8x4xf32>
    %11 = vector.shape_cast %10 : vector<1x8x4xf32> to vector<8x4xf32>
    %cst_12 = arith.constant dense<0.000000e+00> : vector<8x8xf32>
    %12 = tpu.matmul %11, %5, %cst_12 {dimension_numbers = #tpu.dot_dimension_numbers<[1], [0], [0], [1], [0, 0, 1, 1], [], []>} : vector<8x4xf32>, vector<4x8xf32>, vector<8x8xf32> -> vector<8x8xf32>
    %13 = arith.addf %9, %12 : vector<8x8xf32>
    %c0_13 = arith.constant 0 : index
    %c1 = arith.constant 1 : index
    %c0_14 = arith.constant 0 : index
    %c0_15 = arith.constant 0 : index
    %14 = vector.load %arg1[%c0_13, %c1, %c0_14, %c0_15] : memref<1x18x8x9xf32, #tpu.memory_space<vmem>>, vector<1x1x8x9xf32>
    %15 = vector.shape_cast %14 : vector<1x1x8x9xf32> to vector<8x9xf32>
    %16 = vector.extract_strided_slice %15 {offsets = [0, 0], sizes = [8, 8], strides = [1, 1]} : vector<8x9xf32> to vector<8x8xf32>
    %17 = vector.extract_strided_slice %15 {offsets = [0, 1], sizes = [4, 8], strides = [1, 1]} : vector<8x9xf32> to vector<4x8xf32>
    %c1_16 = arith.constant 1 : index
    %c0_17 = arith.constant 0 : index
    %c0_18 = arith.constant 0 : index
    %18 = vector.load %arg2[%c1_16, %c0_17, %c0_18] : memref<3x8x8xf32, #tpu.memory_space<vmem>>, vector<1x8x8xf32>
    %19 = vector.shape_cast %18 : vector<1x8x8xf32> to vector<8x8xf32>
    %cst_19 = arith.constant dense<0.000000e+00> : vector<8x8xf32>
    %20 = tpu.matmul %19, %16, %cst_19 {dimension_numbers = #tpu.dot_dimension_numbers<[1], [0], [0], [1], [0, 0, 1, 1], [], []>} : vector<8x8xf32>, vector<8x8xf32>, vector<8x8xf32> -> vector<8x8xf32>
    %21 = arith.addf %13, %20 : vector<8x8xf32>
    %c1_20 = arith.constant 1 : index
    %c0_21 = arith.constant 0 : index
    %c0_22 = arith.constant 0 : index
    %22 = vector.load %arg3[%c1_20, %c0_21, %c0_22] : memref<3x8x4xf32, #tpu.memory_space<vmem>>, vector<1x8x4xf32>
    %23 = vector.shape_cast %22 : vector<1x8x4xf32> to vector<8x4xf32>
    %cst_23 = arith.constant dense<0.000000e+00> : vector<8x8xf32>
    %24 = tpu.matmul %23, %17, %cst_23 {dimension_numbers = #tpu.dot_dimension_numbers<[1], [0], [0], [1], [0, 0, 1, 1], [], []>} : vector<8x4xf32>, vector<4x8xf32>, vector<8x8xf32> -> vector<8x8xf32>
    %25 = arith.addf %21, %24 : vector<8x8xf32>
    %c0_24 = arith.constant 0 : index
    %c2 = arith.constant 2 : index
    %c0_25 = arith.constant 0 : index
    %c0_26 = arith.constant 0 : index
    %26 = vector.load %arg1[%c0_24, %c2, %c0_25, %c0_26] : memref<1x18x8x9xf32, #tpu.memory_space<vmem>>, vector<1x1x8x9xf32>
    %27 = vector.shape_cast %26 : vector<1x1x8x9xf32> to vector<8x9xf32>
    %28 = vector.extract_strided_slice %27 {offsets = [0, 0], sizes = [8, 8], strides = [1, 1]} : vector<8x9xf32> to vector<8x8xf32>
    %29 = vector.extract_strided_slice %27 {offsets = [0, 1], sizes = [4, 8], strides = [1, 1]} : vector<8x9xf32> to vector<4x8xf32>
    %c2_27 = arith.constant 2 : index
    %c0_28 = arith.constant 0 : index
    %c0_29 = arith.constant 0 : index
    %30 = vector.load %arg2[%c2_27, %c0_28, %c0_29] : memref<3x8x8xf32, #tpu.memory_space<vmem>>, vector<1x8x8xf32>
    %31 = vector.shape_cast %30 : vector<1x8x8xf32> to vector<8x8xf32>
    %cst_30 = arith.constant dense<0.000000e+00> : vector<8x8xf32>
    %32 = tpu.matmul %31, %28, %cst_30 {dimension_numbers = #tpu.dot_dimension_numbers<[1], [0], [0], [1], [0, 0, 1, 1], [], []>} : vector<8x8xf32>, vector<8x8xf32>, vector<8x8xf32> -> vector<8x8xf32>
    %33 = arith.addf %25, %32 : vector<8x8xf32>
    %c2_31 = arith.constant 2 : index
    %c0_32 = arith.constant 0 : index
    %c0_33 = arith.constant 0 : index
    %34 = vector.load %arg3[%c2_31, %c0_32, %c0_33] : memref<3x8x4xf32, #tpu.memory_space<vmem>>, vector<1x8x4xf32>
    %35 = vector.shape_cast %34 : vector<1x8x4xf32> to vector<8x4xf32>
    %cst_34 = arith.constant dense<0.000000e+00> : vector<8x8xf32>
    %36 = tpu.matmul %35, %29, %cst_34 {dimension_numbers = #tpu.dot_dimension_numbers<[1], [0], [0], [1], [0, 0, 1, 1], [], []>} : vector<8x4xf32>, vector<4x8xf32>, vector<8x8xf32> -> vector<8x8xf32>
    %37 = arith.addf %33, %36 : vector<8x8xf32>
    %38 = vector.broadcast %0 : vector<8x1xf32> to vector<8x8xf32>
    %39 = arith.addf %37, %38 : vector<8x8xf32>
    %cst_35 = arith.constant 0.000000e+00 : f32
    %40 = vector.broadcast %cst_35 : f32 to vector<8x8xf32>
    %41 = arith.cmpf ogt, %39, %40 : vector<8x8xf32>
    %cst_36 = arith.constant 0.000000e+00 : f32
    %42 = vector.broadcast %cst_36 : f32 to vector<8x8xf32>
    %43 = arith.minimumf %39, %42 : vector<8x8xf32>
    %44 = math.exp %43 : vector<8x8xf32>
    %cst_37 = arith.constant 1.000000e+00 : f32
    %45 = vector.broadcast %cst_37 : f32 to vector<8x8xf32>
    %46 = arith.subf %44, %45 : vector<8x8xf32>
    %47 = arith.select %41, %39, %46 : vector<8x8xi1>, vector<8x8xf32>
    %c0_38 = arith.constant 0 : index
    %c0_39 = arith.constant 0 : index
    %c0_40 = arith.constant 0 : index
    %c0_41 = arith.constant 0 : index
    %48 = vector.load %arg5[%c0_38, %c0_39, %c0_40, %c0_41] : memref<1x8x8x8xf32, #tpu.memory_space<vmem>>, vector<1x8x1x8xf32>
    %49 = vector.shape_cast %48 : vector<1x8x1x8xf32> to vector<8x8xf32>
    %50 = vector.shape_cast %47 : vector<8x8xf32> to vector<1x8x1x8xf32>
    tpu.vector_store %arg5[%c0_38, %c0_39, %c0_40, %c0_41], %50 {strides = array<i32>} : memref<1x8x8x8xf32, #tpu.memory_space<vmem>>, vector<1x8x1x8xf32>,
    %cst_42 = arith.constant 0.000000e+00 : f32
    %51 = vector.broadcast %cst_42 : f32 to vector<8x8xf32>
    %c0_43 = arith.constant 0 : index
    %c2_44 = arith.constant 2 : index
    %c0_45 = arith.constant 0 : index
    %c0_46 = arith.constant 0 : index
    %52 = vector.load %arg1[%c0_43, %c2_44, %c0_45, %c0_46] : memref<1x18x8x9xf32, #tpu.memory_space<vmem>>, vector<1x1x8x9xf32>
    %53 = vector.shape_cast %52 : vector<1x1x8x9xf32> to vector<8x9xf32>
    %54 = vector.extract_strided_slice %53 {offsets = [0, 0], sizes = [8, 8], strides = [1, 1]} : vector<8x9xf32> to vector<8x8xf32>
    %55 = vector.extract_strided_slice %53 {offsets = [0, 1], sizes = [4, 8], strides = [1, 1]} : vector<8x9xf32> to vector<4x8xf32>
    %c0_47 = arith.constant 0 : index
    %c0_48 = arith.constant 0 : index
    %c0_49 = arith.constant 0 : index
    %56 = vector.load %arg2[%c0_47, %c0_48, %c0_49] : memref<3x8x8xf32, #tpu.memory_space<vmem>>, vector<1x8x8xf32>
    %57 = vector.shape_cast %56 : vector<1x8x8xf32> to vector<8x8xf32>
    %cst_50 = arith.constant dense<0.000000e+00> : vector<8x8xf32>
    %58 = tpu.matmul %57, %54, %cst_50 {dimension_numbers = #tpu.dot_dimension_numbers<[1], [0], [0], [1], [0, 0, 1, 1], [], []>} : vector<8x8xf32>, vector<8x8xf32>, vector<8x8xf32> -> vector<8x8xf32>
    %59 = arith.addf %51, %58 : vector<8x8xf32>
    %c0_51 = arith.constant 0 : index
    %c0_52 = arith.constant 0 : index
    %c0_53 = arith.constant 0 : index
    %60 = vector.load %arg3[%c0_51, %c0_52, %c0_53] : memref<3x8x4xf32, #tpu.memory_space<vmem>>, vector<1x8x4xf32>
    %61 = vector.shape_cast %60 : vector<1x8x4xf32> to vector<8x4xf32>
    %cst_54 = arith.constant dense<0.000000e+00> : vector<8x8xf32>
    %62 = tpu.matmul %61, %55, %cst_54 {dimension_numbers = #tpu.dot_dimension_numbers<[1], [0], [0], [1], [0, 0, 1, 1], [], []>} : vector<8x4xf32>, vector<4x8xf32>, vector<8x8xf32> -> vector<8x8xf32>
    %63 = arith.addf %59, %62 : vector<8x8xf32>
    %c0_55 = arith.constant 0 : index
    %c3 = arith.constant 3 : index
    %c0_56 = arith.constant 0 : index
    %c0_57 = arith.constant 0 : index
    %64 = vector.load %arg1[%c0_55, %c3, %c0_56, %c0_57] : memref<1x18x8x9xf32, #tpu.memory_space<vmem>>, vector<1x1x8x9xf32>
    %65 = vector.shape_cast %64 : vector<1x1x8x9xf32> to vector<8x9xf32>
    %66 = vector.extract_strided_slice %65 {offsets = [0, 0], sizes = [8, 8], strides = [1, 1]} : vector<8x9xf32> to vector<8x8xf32>
    %67 = vector.extract_strided_slice %65 {offsets = [0, 1], sizes = [4, 8], strides = [1, 1]} : vector<8x9xf32> to vector<4x8xf32>
    %c1_58 = arith.constant 1 : index
    %c0_59 = arith.constant 0 : index
    %c0_60 = arith.constant 0 : index
    %68 = vector.load %arg2[%c1_58, %c0_59, %c0_60] : memref<3x8x8xf32, #tpu.memory_space<vmem>>, vector<1x8x8xf32>
    %69 = vector.shape_cast %68 : vector<1x8x8xf32> to vector<8x8xf32>
    %cst_61 = arith.constant dense<0.000000e+00> : vector<8x8xf32>
    %70 = tpu.matmul %69, %66, %cst_61 {dimension_numbers = #tpu.dot_dimension_numbers<[1], [0], [0], [1], [0, 0, 1, 1], [], []>} : vector<8x8xf32>, vector<8x8xf32>, vector<8x8xf32> -> vector<8x8xf32>
    %71 = arith.addf %63, %70 : vector<8x8xf32>
    %c1_62 = arith.constant 1 : index
    %c0_63 = arith.constant 0 : index
    %c0_64 = arith.constant 0 : index
    %72 = vector.load %arg3[%c1_62, %c0_63, %c0_64] : memref<3x8x4xf32, #tpu.memory_space<vmem>>, vector<1x8x4xf32>
    %73 = vector.shape_cast %72 : vector<1x8x4xf32> to vector<8x4xf32>
    %cst_65 = arith.constant dense<0.000000e+00> : vector<8x8xf32>
    %74 = tpu.matmul %73, %67, %cst_65 {dimension_numbers = #tpu.dot_dimension_numbers<[1], [0], [0], [1], [0, 0, 1, 1], [], []>} : vector<8x4xf32>, vector<4x8xf32>, vector<8x8xf32> -> vector<8x8xf32>
    %75 = arith.addf %71, %74 : vector<8x8xf32>
    %c0_66 = arith.constant 0 : index
    %c4 = arith.constant 4 : index
    %c0_67 = arith.constant 0 : index
    %c0_68 = arith.constant 0 : index
    %76 = vector.load %arg1[%c0_66, %c4, %c0_67, %c0_68] : memref<1x18x8x9xf32, #tpu.memory_space<vmem>>, vector<1x1x8x9xf32>
    %77 = vector.shape_cast %76 : vector<1x1x8x9xf32> to vector<8x9xf32>
    %78 = vector.extract_strided_slice %77 {offsets = [0, 0], sizes = [8, 8], strides = [1, 1]} : vector<8x9xf32> to vector<8x8xf32>
    %79 = vector.extract_strided_slice %77 {offsets = [0, 1], sizes = [4, 8], strides = [1, 1]} : vector<8x9xf32> to vector<4x8xf32>
    %c2_69 = arith.constant 2 : index
    %c0_70 = arith.constant 0 : index
    %c0_71 = arith.constant 0 : index
    %80 = vector.load %arg2[%c2_69, %c0_70, %c0_71] : memref<3x8x8xf32, #tpu.memory_space<vmem>>, vector<1x8x8xf32>
    %81 = vector.shape_cast %80 : vector<1x8x8xf32> to vector<8x8xf32>
    %cst_72 = arith.constant dense<0.000000e+00> : vector<8x8xf32>
    %82 = tpu.matmul %81, %78, %cst_72 {dimension_numbers = #tpu.dot_dimension_numbers<[1], [0], [0], [1], [0, 0, 1, 1], [], []>} : vector<8x8xf32>, vector<8x8xf32>, vector<8x8xf32> -> vector<8x8xf32>
    %83 = arith.addf %75, %82 : vector<8x8xf32>
    %c2_73 = arith.constant 2 : index
    %c0_74 = arith.constant 0 : index
    %c0_75 = arith.constant 0 : index
    %84 = vector.load %arg3[%c2_73, %c0_74, %c0_75] : memref<3x8x4xf32, #tpu.memory_space<vmem>>, vector<1x8x4xf32>
    %85 = vector.shape_cast %84 : vector<1x8x4xf32> to vector<8x4xf32>
    %cst_76 = arith.constant dense<0.000000e+00> : vector<8x8xf32>
    %86 = tpu.matmul %85, %79, %cst_76 {dimension_numbers = #tpu.dot_dimension_numbers<[1], [0], [0], [1], [0, 0, 1, 1], [], []>} : vector<8x4xf32>, vector<4x8xf32>, vector<8x8xf32> -> vector<8x8xf32>
    %87 = arith.addf %83, %86 : vector<8x8xf32>
    %88 = vector.broadcast %0 : vector<8x1xf32> to vector<8x8xf32>
    %89 = arith.addf %87, %88 : vector<8x8xf32>
    %cst_77 = arith.constant 0.000000e+00 : f32
    %90 = vector.broadcast %cst_77 : f32 to vector<8x8xf32>
    %91 = arith.cmpf ogt, %89, %90 : vector<8x8xf32>
    %cst_78 = arith.constant 0.000000e+00 : f32
    %92 = vector.broadcast %cst_78 : f32 to vector<8x8xf32>
    %93 = arith.minimumf %89, %92 : vector<8x8xf32>
    %94 = math.exp %93 : vector<8x8xf32>
    %cst_79 = arith.constant 1.000000e+00 : f32
    %95 = vector.broadcast %cst_79 : f32 to vector<8x8xf32>
    %96 = arith.subf %94, %95 : vector<8x8xf32>
    %97 = arith.select %91, %89, %96 : vector<8x8xi1>, vector<8x8xf32>
    %c0_80 = arith.constant 0 : index
    %c0_81 = arith.constant 0 : index
    %c1_82 = arith.constant 1 : index
    %c0_83 = arith.constant 0 : index
    %98 = vector.load %arg5[%c0_80, %c0_81, %c1_82, %c0_83] : memref<1x8x8x8xf32, #tpu.memory_space<vmem>>, vector<1x8x1x8xf32>
    %99 = vector.shape_cast %98 : vector<1x8x1x8xf32> to vector<8x8xf32>
    %100 = vector.shape_cast %97 : vector<8x8xf32> to vector<1x8x1x8xf32>
    tpu.vector_store %arg5[%c0_80, %c0_81, %c1_82, %c0_83], %100 {strides = array<i32>} : memref<1x8x8x8xf32, #tpu.memory_space<vmem>>, vector<1x8x1x8xf32>,
    %cst_84 = arith.constant 0.000000e+00 : f32
    %101 = vector.broadcast %cst_84 : f32 to vector<8x8xf32>
    %c0_85 = arith.constant 0 : index
    %c4_86 = arith.constant 4 : index
    %c0_87 = arith.constant 0 : index
    %c0_88 = arith.constant 0 : index
    %102 = vector.load %arg1[%c0_85, %c4_86, %c0_87, %c0_88] : memref<1x18x8x9xf32, #tpu.memory_space<vmem>>, vector<1x1x8x9xf32>
    %103 = vector.shape_cast %102 : vector<1x1x8x9xf32> to vector<8x9xf32>
    %104 = vector.extract_strided_slice %103 {offsets = [0, 0], sizes = [8, 8], strides = [1, 1]} : vector<8x9xf32> to vector<8x8xf32>
    %105 = vector.extract_strided_slice %103 {offsets = [0, 1], sizes = [4, 8], strides = [1, 1]} : vector<8x9xf32> to vector<4x8xf32>
    %c0_89 = arith.constant 0 : index
    %c0_90 = arith.constant 0 : index
    %c0_91 = arith.constant 0 : index
    %106 = vector.load %arg2[%c0_89, %c0_90, %c0_91] : memref<3x8x8xf32, #tpu.memory_space<vmem>>, vector<1x8x8xf32>
    %107 = vector.shape_cast %106 : vector<1x8x8xf32> to vector<8x8xf32>
    %cst_92 = arith.constant dense<0.000000e+00> : vector<8x8xf32>
    %108 = tpu.matmul %107, %104, %cst_92 {dimension_numbers = #tpu.dot_dimension_numbers<[1], [0], [0], [1], [0, 0, 1, 1], [], []>} : vector<8x8xf32>, vector<8x8xf32>, vector<8x8xf32> -> vector<8x8xf32>
    %109 = arith.addf %101, %108 : vector<8x8xf32>
    %c0_93 = arith.constant 0 : index
    %c0_94 = arith.constant 0 : index
    %c0_95 = arith.constant 0 : index
    %110 = vector.load %arg3[%c0_93, %c0_94, %c0_95] : memref<3x8x4xf32, #tpu.memory_space<vmem>>, vector<1x8x4xf32>
    %111 = vector.shape_cast %110 : vector<1x8x4xf32> to vector<8x4xf32>
    %cst_96 = arith.constant dense<0.000000e+00> : vector<8x8xf32>
    %112 = tpu.matmul %111, %105, %cst_96 {dimension_numbers = #tpu.dot_dimension_numbers<[1], [0], [0], [1], [0, 0, 1, 1], [], []>} : vector<8x4xf32>, vector<4x8xf32>, vector<8x8xf32> -> vector<8x8xf32>
    %113 = arith.addf %109, %112 : vector<8x8xf32>
    %c0_97 = arith.constant 0 : index
    %c5 = arith.constant 5 : index
    %c0_98 = arith.constant 0 : index
    %c0_99 = arith.constant 0 : index
    %114 = vector.load %arg1[%c0_97, %c5, %c0_98, %c0_99] : memref<1x18x8x9xf32, #tpu.memory_space<vmem>>, vector<1x1x8x9xf32>
    %115 = vector.shape_cast %114 : vector<1x1x8x9xf32> to vector<8x9xf32>
    %116 = vector.extract_strided_slice %115 {offsets = [0, 0], sizes = [8, 8], strides = [1, 1]} : vector<8x9xf32> to vector<8x8xf32>
    %117 = vector.extract_strided_slice %115 {offsets = [0, 1], sizes = [4, 8], strides = [1, 1]} : vector<8x9xf32> to vector<4x8xf32>
    %c1_100 = arith.constant 1 : index
    %c0_101 = arith.constant 0 : index
    %c0_102 = arith.constant 0 : index
    %118 = vector.load %arg2[%c1_100, %c0_101, %c0_102] : memref<3x8x8xf32, #tpu.memory_space<vmem>>, vector<1x8x8xf32>
    %119 = vector.shape_cast %118 : vector<1x8x8xf32> to vector<8x8xf32>
    %cst_103 = arith.constant dense<0.000000e+00> : vector<8x8xf32>
    %120 = tpu.matmul %119, %116, %cst_103 {dimension_numbers = #tpu.dot_dimension_numbers<[1], [0], [0], [1], [0, 0, 1, 1], [], []>} : vector<8x8xf32>, vector<8x8xf32>, vector<8x8xf32> -> vector<8x8xf32>
    %121 = arith.addf %113, %120 : vector<8x8xf32>
    %c1_104 = arith.constant 1 : index
    %c0_105 = arith.constant 0 : index
    %c0_106 = arith.constant 0 : index
    %122 = vector.load %arg3[%c1_104, %c0_105, %c0_106] : memref<3x8x4xf32, #tpu.memory_space<vmem>>, vector<1x8x4xf32>
    %123 = vector.shape_cast %122 : vector<1x8x4xf32> to vector<8x4xf32>
    %cst_107 = arith.constant dense<0.000000e+00> : vector<8x8xf32>
    %124 = tpu.matmul %123, %117, %cst_107 {dimension_numbers = #tpu.dot_dimension_numbers<[1], [0], [0], [1], [0, 0, 1, 1], [], []>} : vector<8x4xf32>, vector<4x8xf32>, vector<8x8xf32> -> vector<8x8xf32>
    %125 = arith.addf %121, %124 : vector<8x8xf32>
    %c0_108 = arith.constant 0 : index
    %c6 = arith.constant 6 : index
    %c0_109 = arith.constant 0 : index
    %c0_110 = arith.constant 0 : index
    %126 = vector.load %arg1[%c0_108, %c6, %c0_109, %c0_110] : memref<1x18x8x9xf32, #tpu.memory_space<vmem>>, vector<1x1x8x9xf32>
    %127 = vector.shape_cast %126 : vector<1x1x8x9xf32> to vector<8x9xf32>
    %128 = vector.extract_strided_slice %127 {offsets = [0, 0], sizes = [8, 8], strides = [1, 1]} : vector<8x9xf32> to vector<8x8xf32>
    %129 = vector.extract_strided_slice %127 {offsets = [0, 1], sizes = [4, 8], strides = [1, 1]} : vector<8x9xf32> to vector<4x8xf32>
    %c2_111 = arith.constant 2 : index
    %c0_112 = arith.constant 0 : index
    %c0_113 = arith.constant 0 : index
    %130 = vector.load %arg2[%c2_111, %c0_112, %c0_113] : memref<3x8x8xf32, #tpu.memory_space<vmem>>, vector<1x8x8xf32>
    %131 = vector.shape_cast %130 : vector<1x8x8xf32> to vector<8x8xf32>
    %cst_114 = arith.constant dense<0.000000e+00> : vector<8x8xf32>
    %132 = tpu.matmul %131, %128, %cst_114 {dimension_numbers = #tpu.dot_dimension_numbers<[1], [0], [0], [1], [0, 0, 1, 1], [], []>} : vector<8x8xf32>, vector<8x8xf32>, vector<8x8xf32> -> vector<8x8xf32>
    %133 = arith.addf %125, %132 : vector<8x8xf32>
    %c2_115 = arith.constant 2 : index
    %c0_116 = arith.constant 0 : index
    %c0_117 = arith.constant 0 : index
    %134 = vector.load %arg3[%c2_115, %c0_116, %c0_117] : memref<3x8x4xf32, #tpu.memory_space<vmem>>, vector<1x8x4xf32>
    %135 = vector.shape_cast %134 : vector<1x8x4xf32> to vector<8x4xf32>
    %cst_118 = arith.constant dense<0.000000e+00> : vector<8x8xf32>
    %136 = tpu.matmul %135, %129, %cst_118 {dimension_numbers = #tpu.dot_dimension_numbers<[1], [0], [0], [1], [0, 0, 1, 1], [], []>} : vector<8x4xf32>, vector<4x8xf32>, vector<8x8xf32> -> vector<8x8xf32>
    %137 = arith.addf %133, %136 : vector<8x8xf32>
    %138 = vector.broadcast %0 : vector<8x1xf32> to vector<8x8xf32>
    %139 = arith.addf %137, %138 : vector<8x8xf32>
    %cst_119 = arith.constant 0.000000e+00 : f32
    %140 = vector.broadcast %cst_119 : f32 to vector<8x8xf32>
    %141 = arith.cmpf ogt, %139, %140 : vector<8x8xf32>
    %cst_120 = arith.constant 0.000000e+00 : f32
    %142 = vector.broadcast %cst_120 : f32 to vector<8x8xf32>
    %143 = arith.minimumf %139, %142 : vector<8x8xf32>
    %144 = math.exp %143 : vector<8x8xf32>
    %cst_121 = arith.constant 1.000000e+00 : f32
    %145 = vector.broadcast %cst_121 : f32 to vector<8x8xf32>
    %146 = arith.subf %144, %145 : vector<8x8xf32>
    %147 = arith.select %141, %139, %146 : vector<8x8xi1>, vector<8x8xf32>
    %c0_122 = arith.constant 0 : index
    %c0_123 = arith.constant 0 : index
    %c2_124 = arith.constant 2 : index
    %c0_125 = arith.constant 0 : index
    %148 = vector.load %arg5[%c0_122, %c0_123, %c2_124, %c0_125] : memref<1x8x8x8xf32, #tpu.memory_space<vmem>>, vector<1x8x1x8xf32>
    %149 = vector.shape_cast %148 : vector<1x8x1x8xf32> to vector<8x8xf32>
    %150 = vector.shape_cast %147 : vector<8x8xf32> to vector<1x8x1x8xf32>
    tpu.vector_store %arg5[%c0_122, %c0_123, %c2_124, %c0_125], %150 {strides = array<i32>} : memref<1x8x8x8xf32, #tpu.memory_space<vmem>>, vector<1x8x1x8xf32>,
    %cst_126 = arith.constant 0.000000e+00 : f32
    %151 = vector.broadcast %cst_126 : f32 to vector<8x8xf32>
    %c0_127 = arith.constant 0 : index
    %c6_128 = arith.constant 6 : index
    %c0_129 = arith.constant 0 : index
    %c0_130 = arith.constant 0 : index
    %152 = vector.load %arg1[%c0_127, %c6_128, %c0_129, %c0_130] : memref<1x18x8x9xf32, #tpu.memory_space<vmem>>, vector<1x1x8x9xf32>
    %153 = vector.shape_cast %152 : vector<1x1x8x9xf32> to vector<8x9xf32>
    %154 = vector.extract_strided_slice %153 {offsets = [0, 0], sizes = [8, 8], strides = [1, 1]} : vector<8x9xf32> to vector<8x8xf32>
    %155 = vector.extract_strided_slice %153 {offsets = [0, 1], sizes = [4, 8], strides = [1, 1]} : vector<8x9xf32> to vector<4x8xf32>
    %c0_131 = arith.constant 0 : index
    %c0_132 = arith.constant 0 : index
    %c0_133 = arith.constant 0 : index
    %156 = vector.load %arg2[%c0_131, %c0_132, %c0_133] : memref<3x8x8xf32, #tpu.memory_space<vmem>>, vector<1x8x8xf32>
    %157 = vector.shape_cast %156 : vector<1x8x8xf32> to vector<8x8xf32>
    %cst_134 = arith.constant dense<0.000000e+00> : vector<8x8xf32>
    %158 = tpu.matmul %157, %154, %cst_134 {dimension_numbers = #tpu.dot_dimension_numbers<[1], [0], [0], [1], [0, 0, 1, 1], [], []>} : vector<8x8xf32>, vector<8x8xf32>, vector<8x8xf32> -> vector<8x8xf32>
    %159 = arith.addf %151, %158 : vector<8x8xf32>
    %c0_135 = arith.constant 0 : index
    %c0_136 = arith.constant 0 : index
    %c0_137 = arith.constant 0 : index
    %160 = vector.load %arg3[%c0_135, %c0_136, %c0_137] : memref<3x8x4xf32, #tpu.memory_space<vmem>>, vector<1x8x4xf32>
    %161 = vector.shape_cast %160 : vector<1x8x4xf32> to vector<8x4xf32>
    %cst_138 = arith.constant dense<0.000000e+00> : vector<8x8xf32>
    %162 = tpu.matmul %161, %155, %cst_138 {dimension_numbers = #tpu.dot_dimension_numbers<[1], [0], [0], [1], [0, 0, 1, 1], [], []>} : vector<8x4xf32>, vector<4x8xf32>, vector<8x8xf32> -> vector<8x8xf32>
    %163 = arith.addf %159, %162 : vector<8x8xf32>
    %c0_139 = arith.constant 0 : index
    %c7 = arith.constant 7 : index
    %c0_140 = arith.constant 0 : index
    %c0_141 = arith.constant 0 : index
    %164 = vector.load %arg1[%c0_139, %c7, %c0_140, %c0_141] : memref<1x18x8x9xf32, #tpu.memory_space<vmem>>, vector<1x1x8x9xf32>
    %165 = vector.shape_cast %164 : vector<1x1x8x9xf32> to vector<8x9xf32>
    %166 = vector.extract_strided_slice %165 {offsets = [0, 0], sizes = [8, 8], strides = [1, 1]} : vector<8x9xf32> to vector<8x8xf32>
    %167 = vector.extract_strided_slice %165 {offsets = [0, 1], sizes = [4, 8], strides = [1, 1]} : vector<8x9xf32> to vector<4x8xf32>
    %c1_142 = arith.constant 1 : index
    %c0_143 = arith.constant 0 : index
    %c0_144 = arith.constant 0 : index
    %168 = vector.load %arg2[%c1_142, %c0_143, %c0_144] : memref<3x8x8xf32, #tpu.memory_space<vmem>>, vector<1x8x8xf32>
    %169 = vector.shape_cast %168 : vector<1x8x8xf32> to vector<8x8xf32>
    %cst_145 = arith.constant dense<0.000000e+00> : vector<8x8xf32>
    %170 = tpu.matmul %169, %166, %cst_145 {dimension_numbers = #tpu.dot_dimension_numbers<[1], [0], [0], [1], [0, 0, 1, 1], [], []>} : vector<8x8xf32>, vector<8x8xf32>, vector<8x8xf32> -> vector<8x8xf32>
    %171 = arith.addf %163, %170 : vector<8x8xf32>
    %c1_146 = arith.constant 1 : index
    %c0_147 = arith.constant 0 : index
    %c0_148 = arith.constant 0 : index
    %172 = vector.load %arg3[%c1_146, %c0_147, %c0_148] : memref<3x8x4xf32, #tpu.memory_space<vmem>>, vector<1x8x4xf32>
    %173 = vector.shape_cast %172 : vector<1x8x4xf32> to vector<8x4xf32>
    %cst_149 = arith.constant dense<0.000000e+00> : vector<8x8xf32>
    %174 = tpu.matmul %173, %167, %cst_149 {dimension_numbers = #tpu.dot_dimension_numbers<[1], [0], [0], [1], [0, 0, 1, 1], [], []>} : vector<8x4xf32>, vector<4x8xf32>, vector<8x8xf32> -> vector<8x8xf32>
    %175 = arith.addf %171, %174 : vector<8x8xf32>
    %c0_150 = arith.constant 0 : index
    %c8 = arith.constant 8 : index
    %c0_151 = arith.constant 0 : index
    %c0_152 = arith.constant 0 : index
    %176 = vector.load %arg1[%c0_150, %c8, %c0_151, %c0_152] : memref<1x18x8x9xf32, #tpu.memory_space<vmem>>, vector<1x1x8x9xf32>
    %177 = vector.shape_cast %176 : vector<1x1x8x9xf32> to vector<8x9xf32>
    %178 = vector.extract_strided_slice %177 {offsets = [0, 0], sizes = [8, 8], strides = [1, 1]} : vector<8x9xf32> to vector<8x8xf32>
    %179 = vector.extract_strided_slice %177 {offsets = [0, 1], sizes = [4, 8], strides = [1, 1]} : vector<8x9xf32> to vector<4x8xf32>
    %c2_153 = arith.constant 2 : index
    %c0_154 = arith.constant 0 : index
    %c0_155 = arith.constant 0 : index
    %180 = vector.load %arg2[%c2_153, %c0_154, %c0_155] : memref<3x8x8xf32, #tpu.memory_space<vmem>>, vector<1x8x8xf32>
    %181 = vector.shape_cast %180 : vector<1x8x8xf32> to vector<8x8xf32>
    %cst_156 = arith.constant dense<0.000000e+00> : vector<8x8xf32>
    %182 = tpu.matmul %181, %178, %cst_156 {dimension_numbers = #tpu.dot_dimension_numbers<[1], [0], [0], [1], [0, 0, 1, 1], [], []>} : vector<8x8xf32>, vector<8x8xf32>, vector<8x8xf32> -> vector<8x8xf32>
    %183 = arith.addf %175, %182 : vector<8x8xf32>
    %c2_157 = arith.constant 2 : index
    %c0_158 = arith.constant 0 : index
    %c0_159 = arith.constant 0 : index
    %184 = vector.load %arg3[%c2_157, %c0_158, %c0_159] : memref<3x8x4xf32, #tpu.memory_space<vmem>>, vector<1x8x4xf32>
    %185 = vector.shape_cast %184 : vector<1x8x4xf32> to vector<8x4xf32>
    %cst_160 = arith.constant dense<0.000000e+00> : vector<8x8xf32>
    %186 = tpu.matmul %185, %179, %cst_160 {dimension_numbers = #tpu.dot_dimension_numbers<[1], [0], [0], [1], [0, 0, 1, 1], [], []>} : vector<8x4xf32>, vector<4x8xf32>, vector<8x8xf32> -> vector<8x8xf32>
    %187 = arith.addf %183, %186 : vector<8x8xf32>
    %188 = vector.broadcast %0 : vector<8x1xf32> to vector<8x8xf32>
    %189 = arith.addf %187, %188 : vector<8x8xf32>
    %cst_161 = arith.constant 0.000000e+00 : f32
    %190 = vector.broadcast %cst_161 : f32 to vector<8x8xf32>
    %191 = arith.cmpf ogt, %189, %190 : vector<8x8xf32>
    %cst_162 = arith.constant 0.000000e+00 : f32
    %192 = vector.broadcast %cst_162 : f32 to vector<8x8xf32>
    %193 = arith.minimumf %189, %192 : vector<8x8xf32>
    %194 = math.exp %193 : vector<8x8xf32>
    %cst_163 = arith.constant 1.000000e+00 : f32
    %195 = vector.broadcast %cst_163 : f32 to vector<8x8xf32>
    %196 = arith.subf %194, %195 : vector<8x8xf32>
    %197 = arith.select %191, %189, %196 : vector<8x8xi1>, vector<8x8xf32>
    %c0_164 = arith.constant 0 : index
    %c0_165 = arith.constant 0 : index
    %c3_166 = arith.constant 3 : index
    %c0_167 = arith.constant 0 : index
    %198 = vector.load %arg5[%c0_164, %c0_165, %c3_166, %c0_167] : memref<1x8x8x8xf32, #tpu.memory_space<vmem>>, vector<1x8x1x8xf32>
    %199 = vector.shape_cast %198 : vector<1x8x1x8xf32> to vector<8x8xf32>
    %200 = vector.shape_cast %197 : vector<8x8xf32> to vector<1x8x1x8xf32>
    tpu.vector_store %arg5[%c0_164, %c0_165, %c3_166, %c0_167], %200 {strides = array<i32>} : memref<1x8x8x8xf32, #tpu.memory_space<vmem>>, vector<1x8x1x8xf32>,
    %cst_168 = arith.constant 0.000000e+00 : f32
    %201 = vector.broadcast %cst_168 : f32 to vector<8x8xf32>
    %c0_169 = arith.constant 0 : index
    %c8_170 = arith.constant 8 : index
    %c0_171 = arith.constant 0 : index
    %c0_172 = arith.constant 0 : index
    %202 = vector.load %arg1[%c0_169, %c8_170, %c0_171, %c0_172] : memref<1x18x8x9xf32, #tpu.memory_space<vmem>>, vector<1x1x8x9xf32>
    %203 = vector.shape_cast %202 : vector<1x1x8x9xf32> to vector<8x9xf32>
    %204 = vector.extract_strided_slice %203 {offsets = [0, 0], sizes = [8, 8], strides = [1, 1]} : vector<8x9xf32> to vector<8x8xf32>
    %205 = vector.extract_strided_slice %203 {offsets = [0, 1], sizes = [4, 8], strides = [1, 1]} : vector<8x9xf32> to vector<4x8xf32>
    %c0_173 = arith.constant 0 : index
    %c0_174 = arith.constant 0 : index
    %c0_175 = arith.constant 0 : index
    %206 = vector.load %arg2[%c0_173, %c0_174, %c0_175] : memref<3x8x8xf32, #tpu.memory_space<vmem>>, vector<1x8x8xf32>
    %207 = vector.shape_cast %206 : vector<1x8x8xf32> to vector<8x8xf32>
    %cst_176 = arith.constant dense<0.000000e+00> : vector<8x8xf32>
    %208 = tpu.matmul %207, %204, %cst_176 {dimension_numbers = #tpu.dot_dimension_numbers<[1], [0], [0], [1], [0, 0, 1, 1], [], []>} : vector<8x8xf32>, vector<8x8xf32>, vector<8x8xf32> -> vector<8x8xf32>
    %209 = arith.addf %201, %208 : vector<8x8xf32>
    %c0_177 = arith.constant 0 : index
    %c0_178 = arith.constant 0 : index
    %c0_179 = arith.constant 0 : index
    %210 = vector.load %arg3[%c0_177, %c0_178, %c0_179] : memref<3x8x4xf32, #tpu.memory_space<vmem>>, vector<1x8x4xf32>
    %211 = vector.shape_cast %210 : vector<1x8x4xf32> to vector<8x4xf32>
    %cst_180 = arith.constant dense<0.000000e+00> : vector<8x8xf32>
    %212 = tpu.matmul %211, %205, %cst_180 {dimension_numbers = #tpu.dot_dimension_numbers<[1], [0], [0], [1], [0, 0, 1, 1], [], []>} : vector<8x4xf32>, vector<4x8xf32>, vector<8x8xf32> -> vector<8x8xf32>
    %213 = arith.addf %209, %212 : vector<8x8xf32>
    %c0_181 = arith.constant 0 : index
    %c9 = arith.constant 9 : index
    %c0_182 = arith.constant 0 : index
    %c0_183 = arith.constant 0 : index
    %214 = vector.load %arg1[%c0_181, %c9, %c0_182, %c0_183] : memref<1x18x8x9xf32, #tpu.memory_space<vmem>>, vector<1x1x8x9xf32>
    %215 = vector.shape_cast %214 : vector<1x1x8x9xf32> to vector<8x9xf32>
    %216 = vector.extract_strided_slice %215 {offsets = [0, 0], sizes = [8, 8], strides = [1, 1]} : vector<8x9xf32> to vector<8x8xf32>
    %217 = vector.extract_strided_slice %215 {offsets = [0, 1], sizes = [4, 8], strides = [1, 1]} : vector<8x9xf32> to vector<4x8xf32>
    %c1_184 = arith.constant 1 : index
    %c0_185 = arith.constant 0 : index
    %c0_186 = arith.constant 0 : index
    %218 = vector.load %arg2[%c1_184, %c0_185, %c0_186] : memref<3x8x8xf32, #tpu.memory_space<vmem>>, vector<1x8x8xf32>
    %219 = vector.shape_cast %218 : vector<1x8x8xf32> to vector<8x8xf32>
    %cst_187 = arith.constant dense<0.000000e+00> : vector<8x8xf32>
    %220 = tpu.matmul %219, %216, %cst_187 {dimension_numbers = #tpu.dot_dimension_numbers<[1], [0], [0], [1], [0, 0, 1, 1], [], []>} : vector<8x8xf32>, vector<8x8xf32>, vector<8x8xf32> -> vector<8x8xf32>
    %221 = arith.addf %213, %220 : vector<8x8xf32>
    %c1_188 = arith.constant 1 : index
    %c0_189 = arith.constant 0 : index
    %c0_190 = arith.constant 0 : index
    %222 = vector.load %arg3[%c1_188, %c0_189, %c0_190] : memref<3x8x4xf32, #tpu.memory_space<vmem>>, vector<1x8x4xf32>
    %223 = vector.shape_cast %222 : vector<1x8x4xf32> to vector<8x4xf32>
    %cst_191 = arith.constant dense<0.000000e+00> : vector<8x8xf32>
    %224 = tpu.matmul %223, %217, %cst_191 {dimension_numbers = #tpu.dot_dimension_numbers<[1], [0], [0], [1], [0, 0, 1, 1], [], []>} : vector<8x4xf32>, vector<4x8xf32>, vector<8x8xf32> -> vector<8x8xf32>
    %225 = arith.addf %221, %224 : vector<8x8xf32>
    %c0_192 = arith.constant 0 : index
    %c10 = arith.constant 10 : index
    %c0_193 = arith.constant 0 : index
    %c0_194 = arith.constant 0 : index
    %226 = vector.load %arg1[%c0_192, %c10, %c0_193, %c0_194] : memref<1x18x8x9xf32, #tpu.memory_space<vmem>>, vector<1x1x8x9xf32>
    %227 = vector.shape_cast %226 : vector<1x1x8x9xf32> to vector<8x9xf32>
    %228 = vector.extract_strided_slice %227 {offsets = [0, 0], sizes = [8, 8], strides = [1, 1]} : vector<8x9xf32> to vector<8x8xf32>
    %229 = vector.extract_strided_slice %227 {offsets = [0, 1], sizes = [4, 8], strides = [1, 1]} : vector<8x9xf32> to vector<4x8xf32>
    %c2_195 = arith.constant 2 : index
    %c0_196 = arith.constant 0 : index
    %c0_197 = arith.constant 0 : index
    %230 = vector.load %arg2[%c2_195, %c0_196, %c0_197] : memref<3x8x8xf32, #tpu.memory_space<vmem>>, vector<1x8x8xf32>
    %231 = vector.shape_cast %230 : vector<1x8x8xf32> to vector<8x8xf32>
    %cst_198 = arith.constant dense<0.000000e+00> : vector<8x8xf32>
    %232 = tpu.matmul %231, %228, %cst_198 {dimension_numbers = #tpu.dot_dimension_numbers<[1], [0], [0], [1], [0, 0, 1, 1], [], []>} : vector<8x8xf32>, vector<8x8xf32>, vector<8x8xf32> -> vector<8x8xf32>
    %233 = arith.addf %225, %232 : vector<8x8xf32>
    %c2_199 = arith.constant 2 : index
    %c0_200 = arith.constant 0 : index
    %c0_201 = arith.constant 0 : index
    %234 = vector.load %arg3[%c2_199, %c0_200, %c0_201] : memref<3x8x4xf32, #tpu.memory_space<vmem>>, vector<1x8x4xf32>
    %235 = vector.shape_cast %234 : vector<1x8x4xf32> to vector<8x4xf32>
    %cst_202 = arith.constant dense<0.000000e+00> : vector<8x8xf32>
    %236 = tpu.matmul %235, %229, %cst_202 {dimension_numbers = #tpu.dot_dimension_numbers<[1], [0], [0], [1], [0, 0, 1, 1], [], []>} : vector<8x4xf32>, vector<4x8xf32>, vector<8x8xf32> -> vector<8x8xf32>
    %237 = arith.addf %233, %236 : vector<8x8xf32>
    %238 = vector.broadcast %0 : vector<8x1xf32> to vector<8x8xf32>
    %239 = arith.addf %237, %238 : vector<8x8xf32>
    %cst_203 = arith.constant 0.000000e+00 : f32
    %240 = vector.broadcast %cst_203 : f32 to vector<8x8xf32>
    %241 = arith.cmpf ogt, %239, %240 : vector<8x8xf32>
    %cst_204 = arith.constant 0.000000e+00 : f32
    %242 = vector.broadcast %cst_204 : f32 to vector<8x8xf32>
    %243 = arith.minimumf %239, %242 : vector<8x8xf32>
    %244 = math.exp %243 : vector<8x8xf32>
    %cst_205 = arith.constant 1.000000e+00 : f32
    %245 = vector.broadcast %cst_205 : f32 to vector<8x8xf32>
    %246 = arith.subf %244, %245 : vector<8x8xf32>
    %247 = arith.select %241, %239, %246 : vector<8x8xi1>, vector<8x8xf32>
    %c0_206 = arith.constant 0 : index
    %c0_207 = arith.constant 0 : index
    %c4_208 = arith.constant 4 : index
    %c0_209 = arith.constant 0 : index
    %248 = vector.load %arg5[%c0_206, %c0_207, %c4_208, %c0_209] : memref<1x8x8x8xf32, #tpu.memory_space<vmem>>, vector<1x8x1x8xf32>
    %249 = vector.shape_cast %248 : vector<1x8x1x8xf32> to vector<8x8xf32>
    %250 = vector.shape_cast %247 : vector<8x8xf32> to vector<1x8x1x8xf32>
    tpu.vector_store %arg5[%c0_206, %c0_207, %c4_208, %c0_209], %250 {strides = array<i32>} : memref<1x8x8x8xf32, #tpu.memory_space<vmem>>, vector<1x8x1x8xf32>,
    %cst_210 = arith.constant 0.000000e+00 : f32
    %251 = vector.broadcast %cst_210 : f32 to vector<8x8xf32>
    %c0_211 = arith.constant 0 : index
    %c10_212 = arith.constant 10 : index
    %c0_213 = arith.constant 0 : index
    %c0_214 = arith.constant 0 : index
    %252 = vector.load %arg1[%c0_211, %c10_212, %c0_213, %c0_214] : memref<1x18x8x9xf32, #tpu.memory_space<vmem>>, vector<1x1x8x9xf32>
    %253 = vector.shape_cast %252 : vector<1x1x8x9xf32> to vector<8x9xf32>
    %254 = vector.extract_strided_slice %253 {offsets = [0, 0], sizes = [8, 8], strides = [1, 1]} : vector<8x9xf32> to vector<8x8xf32>
    %255 = vector.extract_strided_slice %253 {offsets = [0, 1], sizes = [4, 8], strides = [1, 1]} : vector<8x9xf32> to vector<4x8xf32>
    %c0_215 = arith.constant 0 : index
    %c0_216 = arith.constant 0 : index
    %c0_217 = arith.constant 0 : index
    %256 = vector.load %arg2[%c0_215, %c0_216, %c0_217] : memref<3x8x8xf32, #tpu.memory_space<vmem>>, vector<1x8x8xf32>
    %257 = vector.shape_cast %256 : vector<1x8x8xf32> to vector<8x8xf32>
    %cst_218 = arith.constant dense<0.000000e+00> : vector<8x8xf32>
    %258 = tpu.matmul %257, %254, %cst_218 {dimension_numbers = #tpu.dot_dimension_numbers<[1], [0], [0], [1], [0, 0, 1, 1], [], []>} : vector<8x8xf32>, vector<8x8xf32>, vector<8x8xf32> -> vector<8x8xf32>
    %259 = arith.addf %251, %258 : vector<8x8xf32>
    %c0_219 = arith.constant 0 : index
    %c0_220 = arith.constant 0 : index
    %c0_221 = arith.constant 0 : index
    %260 = vector.load %arg3[%c0_219, %c0_220, %c0_221] : memref<3x8x4xf32, #tpu.memory_space<vmem>>, vector<1x8x4xf32>
    %261 = vector.shape_cast %260 : vector<1x8x4xf32> to vector<8x4xf32>
    %cst_222 = arith.constant dense<0.000000e+00> : vector<8x8xf32>
    %262 = tpu.matmul %261, %255, %cst_222 {dimension_numbers = #tpu.dot_dimension_numbers<[1], [0], [0], [1], [0, 0, 1, 1], [], []>} : vector<8x4xf32>, vector<4x8xf32>, vector<8x8xf32> -> vector<8x8xf32>
    %263 = arith.addf %259, %262 : vector<8x8xf32>
    %c0_223 = arith.constant 0 : index
    %c11 = arith.constant 11 : index
    %c0_224 = arith.constant 0 : index
    %c0_225 = arith.constant 0 : index
    %264 = vector.load %arg1[%c0_223, %c11, %c0_224, %c0_225] : memref<1x18x8x9xf32, #tpu.memory_space<vmem>>, vector<1x1x8x9xf32>
    %265 = vector.shape_cast %264 : vector<1x1x8x9xf32> to vector<8x9xf32>
    %266 = vector.extract_strided_slice %265 {offsets = [0, 0], sizes = [8, 8], strides = [1, 1]} : vector<8x9xf32> to vector<8x8xf32>
    %267 = vector.extract_strided_slice %265 {offsets = [0, 1], sizes = [4, 8], strides = [1, 1]} : vector<8x9xf32> to vector<4x8xf32>
    %c1_226 = arith.constant 1 : index
    %c0_227 = arith.constant 0 : index
    %c0_228 = arith.constant 0 : index
    %268 = vector.load %arg2[%c1_226, %c0_227, %c0_228] : memref<3x8x8xf32, #tpu.memory_space<vmem>>, vector<1x8x8xf32>
    %269 = vector.shape_cast %268 : vector<1x8x8xf32> to vector<8x8xf32>
    %cst_229 = arith.constant dense<0.000000e+00> : vector<8x8xf32>
    %270 = tpu.matmul %269, %266, %cst_229 {dimension_numbers = #tpu.dot_dimension_numbers<[1], [0], [0], [1], [0, 0, 1, 1], [], []>} : vector<8x8xf32>, vector<8x8xf32>, vector<8x8xf32> -> vector<8x8xf32>
    %271 = arith.addf %263, %270 : vector<8x8xf32>
    %c1_230 = arith.constant 1 : index
    %c0_231 = arith.constant 0 : index
    %c0_232 = arith.constant 0 : index
    %272 = vector.load %arg3[%c1_230, %c0_231, %c0_232] : memref<3x8x4xf32, #tpu.memory_space<vmem>>, vector<1x8x4xf32>
    %273 = vector.shape_cast %272 : vector<1x8x4xf32> to vector<8x4xf32>
    %cst_233 = arith.constant dense<0.000000e+00> : vector<8x8xf32>
    %274 = tpu.matmul %273, %267, %cst_233 {dimension_numbers = #tpu.dot_dimension_numbers<[1], [0], [0], [1], [0, 0, 1, 1], [], []>} : vector<8x4xf32>, vector<4x8xf32>, vector<8x8xf32> -> vector<8x8xf32>
    %275 = arith.addf %271, %274 : vector<8x8xf32>
    %c0_234 = arith.constant 0 : index
    %c12 = arith.constant 12 : index
    %c0_235 = arith.constant 0 : index
    %c0_236 = arith.constant 0 : index
    %276 = vector.load %arg1[%c0_234, %c12, %c0_235, %c0_236] : memref<1x18x8x9xf32, #tpu.memory_space<vmem>>, vector<1x1x8x9xf32>
    %277 = vector.shape_cast %276 : vector<1x1x8x9xf32> to vector<8x9xf32>
    %278 = vector.extract_strided_slice %277 {offsets = [0, 0], sizes = [8, 8], strides = [1, 1]} : vector<8x9xf32> to vector<8x8xf32>
    %279 = vector.extract_strided_slice %277 {offsets = [0, 1], sizes = [4, 8], strides = [1, 1]} : vector<8x9xf32> to vector<4x8xf32>
    %c2_237 = arith.constant 2 : index
    %c0_238 = arith.constant 0 : index
    %c0_239 = arith.constant 0 : index
    %280 = vector.load %arg2[%c2_237, %c0_238, %c0_239] : memref<3x8x8xf32, #tpu.memory_space<vmem>>, vector<1x8x8xf32>
    %281 = vector.shape_cast %280 : vector<1x8x8xf32> to vector<8x8xf32>
    %cst_240 = arith.constant dense<0.000000e+00> : vector<8x8xf32>
    %282 = tpu.matmul %281, %278, %cst_240 {dimension_numbers = #tpu.dot_dimension_numbers<[1], [0], [0], [1], [0, 0, 1, 1], [], []>} : vector<8x8xf32>, vector<8x8xf32>, vector<8x8xf32> -> vector<8x8xf32>
    %283 = arith.addf %275, %282 : vector<8x8xf32>
    %c2_241 = arith.constant 2 : index
    %c0_242 = arith.constant 0 : index
    %c0_243 = arith.constant 0 : index
    %284 = vector.load %arg3[%c2_241, %c0_242, %c0_243] : memref<3x8x4xf32, #tpu.memory_space<vmem>>, vector<1x8x4xf32>
    %285 = vector.shape_cast %284 : vector<1x8x4xf32> to vector<8x4xf32>
    %cst_244 = arith.constant dense<0.000000e+00> : vector<8x8xf32>
    %286 = tpu.matmul %285, %279, %cst_244 {dimension_numbers = #tpu.dot_dimension_numbers<[1], [0], [0], [1], [0, 0, 1, 1], [], []>} : vector<8x4xf32>, vector<4x8xf32>, vector<8x8xf32> -> vector<8x8xf32>
    %287 = arith.addf %283, %286 : vector<8x8xf32>
    %288 = vector.broadcast %0 : vector<8x1xf32> to vector<8x8xf32>
    %289 = arith.addf %287, %288 : vector<8x8xf32>
    %cst_245 = arith.constant 0.000000e+00 : f32
    %290 = vector.broadcast %cst_245 : f32 to vector<8x8xf32>
    %291 = arith.cmpf ogt, %289, %290 : vector<8x8xf32>
    %cst_246 = arith.constant 0.000000e+00 : f32
    %292 = vector.broadcast %cst_246 : f32 to vector<8x8xf32>
    %293 = arith.minimumf %289, %292 : vector<8x8xf32>
    %294 = math.exp %293 : vector<8x8xf32>
    %cst_247 = arith.constant 1.000000e+00 : f32
    %295 = vector.broadcast %cst_247 : f32 to vector<8x8xf32>
    %296 = arith.subf %294, %295 : vector<8x8xf32>
    %297 = arith.select %291, %289, %296 : vector<8x8xi1>, vector<8x8xf32>
    %c0_248 = arith.constant 0 : index
    %c0_249 = arith.constant 0 : index
    %c5_250 = arith.constant 5 : index
    %c0_251 = arith.constant 0 : index
    %298 = vector.load %arg5[%c0_248, %c0_249, %c5_250, %c0_251] : memref<1x8x8x8xf32, #tpu.memory_space<vmem>>, vector<1x8x1x8xf32>
    %299 = vector.shape_cast %298 : vector<1x8x1x8xf32> to vector<8x8xf32>
    %300 = vector.shape_cast %297 : vector<8x8xf32> to vector<1x8x1x8xf32>
    tpu.vector_store %arg5[%c0_248, %c0_249, %c5_250, %c0_251], %300 {strides = array<i32>} : memref<1x8x8x8xf32, #tpu.memory_space<vmem>>, vector<1x8x1x8xf32>,
    %cst_252 = arith.constant 0.000000e+00 : f32
    %301 = vector.broadcast %cst_252 : f32 to vector<8x8xf32>
    %c0_253 = arith.constant 0 : index
    %c12_254 = arith.constant 12 : index
    %c0_255 = arith.constant 0 : index
    %c0_256 = arith.constant 0 : index
    %302 = vector.load %arg1[%c0_253, %c12_254, %c0_255, %c0_256] : memref<1x18x8x9xf32, #tpu.memory_space<vmem>>, vector<1x1x8x9xf32>
    %303 = vector.shape_cast %302 : vector<1x1x8x9xf32> to vector<8x9xf32>
    %304 = vector.extract_strided_slice %303 {offsets = [0, 0], sizes = [8, 8], strides = [1, 1]} : vector<8x9xf32> to vector<8x8xf32>
    %305 = vector.extract_strided_slice %303 {offsets = [0, 1], sizes = [4, 8], strides = [1, 1]} : vector<8x9xf32> to vector<4x8xf32>
    %c0_257 = arith.constant 0 : index
    %c0_258 = arith.constant 0 : index
    %c0_259 = arith.constant 0 : index
    %306 = vector.load %arg2[%c0_257, %c0_258, %c0_259] : memref<3x8x8xf32, #tpu.memory_space<vmem>>, vector<1x8x8xf32>
    %307 = vector.shape_cast %306 : vector<1x8x8xf32> to vector<8x8xf32>
    %cst_260 = arith.constant dense<0.000000e+00> : vector<8x8xf32>
    %308 = tpu.matmul %307, %304, %cst_260 {dimension_numbers = #tpu.dot_dimension_numbers<[1], [0], [0], [1], [0, 0, 1, 1], [], []>} : vector<8x8xf32>, vector<8x8xf32>, vector<8x8xf32> -> vector<8x8xf32>
    %309 = arith.addf %301, %308 : vector<8x8xf32>
    %c0_261 = arith.constant 0 : index
    %c0_262 = arith.constant 0 : index
    %c0_263 = arith.constant 0 : index
    %310 = vector.load %arg3[%c0_261, %c0_262, %c0_263] : memref<3x8x4xf32, #tpu.memory_space<vmem>>, vector<1x8x4xf32>
    %311 = vector.shape_cast %310 : vector<1x8x4xf32> to vector<8x4xf32>
    %cst_264 = arith.constant dense<0.000000e+00> : vector<8x8xf32>
    %312 = tpu.matmul %311, %305, %cst_264 {dimension_numbers = #tpu.dot_dimension_numbers<[1], [0], [0], [1], [0, 0, 1, 1], [], []>} : vector<8x4xf32>, vector<4x8xf32>, vector<8x8xf32> -> vector<8x8xf32>
    %313 = arith.addf %309, %312 : vector<8x8xf32>
    %c0_265 = arith.constant 0 : index
    %c13 = arith.constant 13 : index
    %c0_266 = arith.constant 0 : index
    %c0_267 = arith.constant 0 : index
    %314 = vector.load %arg1[%c0_265, %c13, %c0_266, %c0_267] : memref<1x18x8x9xf32, #tpu.memory_space<vmem>>, vector<1x1x8x9xf32>
    %315 = vector.shape_cast %314 : vector<1x1x8x9xf32> to vector<8x9xf32>
    %316 = vector.extract_strided_slice %315 {offsets = [0, 0], sizes = [8, 8], strides = [1, 1]} : vector<8x9xf32> to vector<8x8xf32>
    %317 = vector.extract_strided_slice %315 {offsets = [0, 1], sizes = [4, 8], strides = [1, 1]} : vector<8x9xf32> to vector<4x8xf32>
    %c1_268 = arith.constant 1 : index
    %c0_269 = arith.constant 0 : index
    %c0_270 = arith.constant 0 : index
    %318 = vector.load %arg2[%c1_268, %c0_269, %c0_270] : memref<3x8x8xf32, #tpu.memory_space<vmem>>, vector<1x8x8xf32>
    %319 = vector.shape_cast %318 : vector<1x8x8xf32> to vector<8x8xf32>
    %cst_271 = arith.constant dense<0.000000e+00> : vector<8x8xf32>
    %320 = tpu.matmul %319, %316, %cst_271 {dimension_numbers = #tpu.dot_dimension_numbers<[1], [0], [0], [1], [0, 0, 1, 1], [], []>} : vector<8x8xf32>, vector<8x8xf32>, vector<8x8xf32> -> vector<8x8xf32>
    %321 = arith.addf %313, %320 : vector<8x8xf32>
    %c1_272 = arith.constant 1 : index
    %c0_273 = arith.constant 0 : index
    %c0_274 = arith.constant 0 : index
    %322 = vector.load %arg3[%c1_272, %c0_273, %c0_274] : memref<3x8x4xf32, #tpu.memory_space<vmem>>, vector<1x8x4xf32>
    %323 = vector.shape_cast %322 : vector<1x8x4xf32> to vector<8x4xf32>
    %cst_275 = arith.constant dense<0.000000e+00> : vector<8x8xf32>
    %324 = tpu.matmul %323, %317, %cst_275 {dimension_numbers = #tpu.dot_dimension_numbers<[1], [0], [0], [1], [0, 0, 1, 1], [], []>} : vector<8x4xf32>, vector<4x8xf32>, vector<8x8xf32> -> vector<8x8xf32>
    %325 = arith.addf %321, %324 : vector<8x8xf32>
    %c0_276 = arith.constant 0 : index
    %c14 = arith.constant 14 : index
    %c0_277 = arith.constant 0 : index
    %c0_278 = arith.constant 0 : index
    %326 = vector.load %arg1[%c0_276, %c14, %c0_277, %c0_278] : memref<1x18x8x9xf32, #tpu.memory_space<vmem>>, vector<1x1x8x9xf32>
    %327 = vector.shape_cast %326 : vector<1x1x8x9xf32> to vector<8x9xf32>
    %328 = vector.extract_strided_slice %327 {offsets = [0, 0], sizes = [8, 8], strides = [1, 1]} : vector<8x9xf32> to vector<8x8xf32>
    %329 = vector.extract_strided_slice %327 {offsets = [0, 1], sizes = [4, 8], strides = [1, 1]} : vector<8x9xf32> to vector<4x8xf32>
    %c2_279 = arith.constant 2 : index
    %c0_280 = arith.constant 0 : index
    %c0_281 = arith.constant 0 : index
    %330 = vector.load %arg2[%c2_279, %c0_280, %c0_281] : memref<3x8x8xf32, #tpu.memory_space<vmem>>, vector<1x8x8xf32>
    %331 = vector.shape_cast %330 : vector<1x8x8xf32> to vector<8x8xf32>
    %cst_282 = arith.constant dense<0.000000e+00> : vector<8x8xf32>
    %332 = tpu.matmul %331, %328, %cst_282 {dimension_numbers = #tpu.dot_dimension_numbers<[1], [0], [0], [1], [0, 0, 1, 1], [], []>} : vector<8x8xf32>, vector<8x8xf32>, vector<8x8xf32> -> vector<8x8xf32>
    %333 = arith.addf %325, %332 : vector<8x8xf32>
    %c2_283 = arith.constant 2 : index
    %c0_284 = arith.constant 0 : index
    %c0_285 = arith.constant 0 : index
    %334 = vector.load %arg3[%c2_283, %c0_284, %c0_285] : memref<3x8x4xf32, #tpu.memory_space<vmem>>, vector<1x8x4xf32>
    %335 = vector.shape_cast %334 : vector<1x8x4xf32> to vector<8x4xf32>
    %cst_286 = arith.constant dense<0.000000e+00> : vector<8x8xf32>
    %336 = tpu.matmul %335, %329, %cst_286 {dimension_numbers = #tpu.dot_dimension_numbers<[1], [0], [0], [1], [0, 0, 1, 1], [], []>} : vector<8x4xf32>, vector<4x8xf32>, vector<8x8xf32> -> vector<8x8xf32>
    %337 = arith.addf %333, %336 : vector<8x8xf32>
    %338 = vector.broadcast %0 : vector<8x1xf32> to vector<8x8xf32>
    %339 = arith.addf %337, %338 : vector<8x8xf32>
    %cst_287 = arith.constant 0.000000e+00 : f32
    %340 = vector.broadcast %cst_287 : f32 to vector<8x8xf32>
    %341 = arith.cmpf ogt, %339, %340 : vector<8x8xf32>
    %cst_288 = arith.constant 0.000000e+00 : f32
    %342 = vector.broadcast %cst_288 : f32 to vector<8x8xf32>
    %343 = arith.minimumf %339, %342 : vector<8x8xf32>
    %344 = math.exp %343 : vector<8x8xf32>
    %cst_289 = arith.constant 1.000000e+00 : f32
    %345 = vector.broadcast %cst_289 : f32 to vector<8x8xf32>
    %346 = arith.subf %344, %345 : vector<8x8xf32>
    %347 = arith.select %341, %339, %346 : vector<8x8xi1>, vector<8x8xf32>
    %c0_290 = arith.constant 0 : index
    %c0_291 = arith.constant 0 : index
    %c6_292 = arith.constant 6 : index
    %c0_293 = arith.constant 0 : index
    %348 = vector.load %arg5[%c0_290, %c0_291, %c6_292, %c0_293] : memref<1x8x8x8xf32, #tpu.memory_space<vmem>>, vector<1x8x1x8xf32>
    %349 = vector.shape_cast %348 : vector<1x8x1x8xf32> to vector<8x8xf32>
    %350 = vector.shape_cast %347 : vector<8x8xf32> to vector<1x8x1x8xf32>
    tpu.vector_store %arg5[%c0_290, %c0_291, %c6_292, %c0_293], %350 {strides = array<i32>} : memref<1x8x8x8xf32, #tpu.memory_space<vmem>>, vector<1x8x1x8xf32>,
    %cst_294 = arith.constant 0.000000e+00 : f32
    %351 = vector.broadcast %cst_294 : f32 to vector<8x8xf32>
    %c0_295 = arith.constant 0 : index
    %c14_296 = arith.constant 14 : index
    %c0_297 = arith.constant 0 : index
    %c0_298 = arith.constant 0 : index
    %352 = vector.load %arg1[%c0_295, %c14_296, %c0_297, %c0_298] : memref<1x18x8x9xf32, #tpu.memory_space<vmem>>, vector<1x1x8x9xf32>
    %353 = vector.shape_cast %352 : vector<1x1x8x9xf32> to vector<8x9xf32>
    %354 = vector.extract_strided_slice %353 {offsets = [0, 0], sizes = [8, 8], strides = [1, 1]} : vector<8x9xf32> to vector<8x8xf32>
    %355 = vector.extract_strided_slice %353 {offsets = [0, 1], sizes = [4, 8], strides = [1, 1]} : vector<8x9xf32> to vector<4x8xf32>
    %c0_299 = arith.constant 0 : index
    %c0_300 = arith.constant 0 : index
    %c0_301 = arith.constant 0 : index
    %356 = vector.load %arg2[%c0_299, %c0_300, %c0_301] : memref<3x8x8xf32, #tpu.memory_space<vmem>>, vector<1x8x8xf32>
    %357 = vector.shape_cast %356 : vector<1x8x8xf32> to vector<8x8xf32>
    %cst_302 = arith.constant dense<0.000000e+00> : vector<8x8xf32>
    %358 = tpu.matmul %357, %354, %cst_302 {dimension_numbers = #tpu.dot_dimension_numbers<[1], [0], [0], [1], [0, 0, 1, 1], [], []>} : vector<8x8xf32>, vector<8x8xf32>, vector<8x8xf32> -> vector<8x8xf32>
    %359 = arith.addf %351, %358 : vector<8x8xf32>
    %c0_303 = arith.constant 0 : index
    %c0_304 = arith.constant 0 : index
    %c0_305 = arith.constant 0 : index
    %360 = vector.load %arg3[%c0_303, %c0_304, %c0_305] : memref<3x8x4xf32, #tpu.memory_space<vmem>>, vector<1x8x4xf32>
    %361 = vector.shape_cast %360 : vector<1x8x4xf32> to vector<8x4xf32>
    %cst_306 = arith.constant dense<0.000000e+00> : vector<8x8xf32>
    %362 = tpu.matmul %361, %355, %cst_306 {dimension_numbers = #tpu.dot_dimension_numbers<[1], [0], [0], [1], [0, 0, 1, 1], [], []>} : vector<8x4xf32>, vector<4x8xf32>, vector<8x8xf32> -> vector<8x8xf32>
    %363 = arith.addf %359, %362 : vector<8x8xf32>
    %c0_307 = arith.constant 0 : index
    %c15 = arith.constant 15 : index
    %c0_308 = arith.constant 0 : index
    %c0_309 = arith.constant 0 : index
    %364 = vector.load %arg1[%c0_307, %c15, %c0_308, %c0_309] : memref<1x18x8x9xf32, #tpu.memory_space<vmem>>, vector<1x1x8x9xf32>
    %365 = vector.shape_cast %364 : vector<1x1x8x9xf32> to vector<8x9xf32>
    %366 = vector.extract_strided_slice %365 {offsets = [0, 0], sizes = [8, 8], strides = [1, 1]} : vector<8x9xf32> to vector<8x8xf32>
    %367 = vector.extract_strided_slice %365 {offsets = [0, 1], sizes = [4, 8], strides = [1, 1]} : vector<8x9xf32> to vector<4x8xf32>
    %c1_310 = arith.constant 1 : index
    %c0_311 = arith.constant 0 : index
    %c0_312 = arith.constant 0 : index
    %368 = vector.load %arg2[%c1_310, %c0_311, %c0_312] : memref<3x8x8xf32, #tpu.memory_space<vmem>>, vector<1x8x8xf32>
    %369 = vector.shape_cast %368 : vector<1x8x8xf32> to vector<8x8xf32>
    %cst_313 = arith.constant dense<0.000000e+00> : vector<8x8xf32>
    %370 = tpu.matmul %369, %366, %cst_313 {dimension_numbers = #tpu.dot_dimension_numbers<[1], [0], [0], [1], [0, 0, 1, 1], [], []>} : vector<8x8xf32>, vector<8x8xf32>, vector<8x8xf32> -> vector<8x8xf32>
    %371 = arith.addf %363, %370 : vector<8x8xf32>
    %c1_314 = arith.constant 1 : index
    %c0_315 = arith.constant 0 : index
    %c0_316 = arith.constant 0 : index
    %372 = vector.load %arg3[%c1_314, %c0_315, %c0_316] : memref<3x8x4xf32, #tpu.memory_space<vmem>>, vector<1x8x4xf32>
    %373 = vector.shape_cast %372 : vector<1x8x4xf32> to vector<8x4xf32>
    %cst_317 = arith.constant dense<0.000000e+00> : vector<8x8xf32>
    %374 = tpu.matmul %373, %367, %cst_317 {dimension_numbers = #tpu.dot_dimension_numbers<[1], [0], [0], [1], [0, 0, 1, 1], [], []>} : vector<8x4xf32>, vector<4x8xf32>, vector<8x8xf32> -> vector<8x8xf32>
    %375 = arith.addf %371, %374 : vector<8x8xf32>
    %c0_318 = arith.constant 0 : index
    %c16 = arith.constant 16 : index
    %c0_319 = arith.constant 0 : index
    %c0_320 = arith.constant 0 : index
    %376 = vector.load %arg1[%c0_318, %c16, %c0_319, %c0_320] : memref<1x18x8x9xf32, #tpu.memory_space<vmem>>, vector<1x1x8x9xf32>
    %377 = vector.shape_cast %376 : vector<1x1x8x9xf32> to vector<8x9xf32>
    %378 = vector.extract_strided_slice %377 {offsets = [0, 0], sizes = [8, 8], strides = [1, 1]} : vector<8x9xf32> to vector<8x8xf32>
    %379 = vector.extract_strided_slice %377 {offsets = [0, 1], sizes = [4, 8], strides = [1, 1]} : vector<8x9xf32> to vector<4x8xf32>
    %c2_321 = arith.constant 2 : index
    %c0_322 = arith.constant 0 : index
    %c0_323 = arith.constant 0 : index
    %380 = vector.load %arg2[%c2_321, %c0_322, %c0_323] : memref<3x8x8xf32, #tpu.memory_space<vmem>>, vector<1x8x8xf32>
    %381 = vector.shape_cast %380 : vector<1x8x8xf32> to vector<8x8xf32>
    %cst_324 = arith.constant dense<0.000000e+00> : vector<8x8xf32>
    %382 = tpu.matmul %381, %378, %cst_324 {dimension_numbers = #tpu.dot_dimension_numbers<[1], [0], [0], [1], [0, 0, 1, 1], [], []>} : vector<8x8xf32>, vector<8x8xf32>, vector<8x8xf32> -> vector<8x8xf32>
    %383 = arith.addf %375, %382 : vector<8x8xf32>
    %c2_325 = arith.constant 2 : index
    %c0_326 = arith.constant 0 : index
    %c0_327 = arith.constant 0 : index
    %384 = vector.load %arg3[%c2_325, %c0_326, %c0_327] : memref<3x8x4xf32, #tpu.memory_space<vmem>>, vector<1x8x4xf32>
    %385 = vector.shape_cast %384 : vector<1x8x4xf32> to vector<8x4xf32>
    %cst_328 = arith.constant dense<0.000000e+00> : vector<8x8xf32>
    %386 = tpu.matmul %385, %379, %cst_328 {dimension_numbers = #tpu.dot_dimension_numbers<[1], [0], [0], [1], [0, 0, 1, 1], [], []>} : vector<8x4xf32>, vector<4x8xf32>, vector<8x8xf32> -> vector<8x8xf32>
    %387 = arith.addf %383, %386 : vector<8x8xf32>
    %388 = vector.broadcast %0 : vector<8x1xf32> to vector<8x8xf32>
    %389 = arith.addf %387, %388 : vector<8x8xf32>
    %cst_329 = arith.constant 0.000000e+00 : f32
    %390 = vector.broadcast %cst_329 : f32 to vector<8x8xf32>
    %391 = arith.cmpf ogt, %389, %390 : vector<8x8xf32>
    %cst_330 = arith.constant 0.000000e+00 : f32
    %392 = vector.broadcast %cst_330 : f32 to vector<8x8xf32>
    %393 = arith.minimumf %389, %392 : vector<8x8xf32>
    %394 = math.exp %393 : vector<8x8xf32>
    %cst_331 = arith.constant 1.000000e+00 : f32
    %395 = vector.broadcast %cst_331 : f32 to vector<8x8xf32>
    %396 = arith.subf %394, %395 : vector<8x8xf32>
    %397 = arith.select %391, %389, %396 : vector<8x8xi1>, vector<8x8xf32>
    %c0_332 = arith.constant 0 : index
    %c0_333 = arith.constant 0 : index
    %c7_334 = arith.constant 7 : index
    %c0_335 = arith.constant 0 : index
    %398 = vector.load %arg5[%c0_332, %c0_333, %c7_334, %c0_335] : memref<1x8x8x8xf32, #tpu.memory_space<vmem>>, vector<1x8x1x8xf32>
    %399 = vector.shape_cast %398 : vector<1x8x1x8xf32> to vector<8x8xf32>
    %400 = vector.shape_cast %397 : vector<8x8xf32> to vector<1x8x1x8xf32>
    tpu.vector_store %arg5[%c0_332, %c0_333, %c7_334, %c0_335], %400 {strides = array<i32>} : memref<1x8x8x8xf32, #tpu.memory_space<vmem>>, vector<1x8x1x8xf32>,
    return
  }
  func.func @transform_0(%arg0: i32) -> (i32, i32, i32, i32) {
    %c0_i32 = arith.constant 0 : i32
    %c0_i32_0 = arith.constant 0 : i32
    %c0_i32_1 = arith.constant 0 : i32
    %c0_i32_2 = arith.constant 0 : i32
    return %arg0, %c0_i32, %c0_i32_0, %c0_i32_1 : i32, i32, i32, i32
  }
  func.func @transform_1(%arg0: i32) -> (i32, i32, i32) {
    %c0_i32 = arith.constant 0 : i32
    %c0_i32_0 = arith.constant 0 : i32
    %c0_i32_1 = arith.constant 0 : i32
    %c0_i32_2 = arith.constant 0 : i32
    return %c0_i32, %c0_i32_0, %c0_i32_1 : i32, i32, i32
  }
  func.func @transform_2(%arg0: i32) -> (i32, i32, i32) {
    %c0_i32 = arith.constant 0 : i32
    %c0_i32_0 = arith.constant 0 : i32
    %c0_i32_1 = arith.constant 0 : i32
    %c0_i32_2 = arith.constant 0 : i32
    return %c0_i32, %c0_i32_0, %c0_i32_1 : i32, i32, i32
  }
  func.func @transform_3(%arg0: i32) -> (i32, i32) {
    %c0_i32 = arith.constant 0 : i32
    %c0_i32_0 = arith.constant 0 : i32
    %c0_i32_1 = arith.constant 0 : i32
    return %c0_i32, %c0_i32_0 : i32, i32
  }
  func.func @transform_4(%arg0: i32) -> (i32, i32, i32, i32) {
    %c0_i32 = arith.constant 0 : i32
    %c0_i32_0 = arith.constant 0 : i32
    %c0_i32_1 = arith.constant 0 : i32
    %c0_i32_2 = arith.constant 0 : i32
    return %arg0, %c0_i32, %c0_i32_0, %c0_i32_1 : i32, i32, i32, i32
  }
}

</mosaic_0001>

<llo_original>
// kernel: tpu_custom_call.1
$region0: #{tpu_custom_call.1}
  #allocation0 [shape = 'u32[]', space=smem, size = 0x4, offset = 0x4, fixed_abs, tag = 'smem constant byte address 0x4 - core index']
  #allocation1 [shape = 'u32[72,128]{1,0:T(1,128)}', space=vmem, size = 0x9000, scoped, tag = 'internal scratch']
  %s0 = inlined_call_operand.vmem [shape: f32[2,18,8,9], index: 0, kind: input, shape index: {}]
  %s1 = inlined_call_operand.vmem [shape: f32[3,8,8], index: 1, kind: input, shape index: {}]
  %s2 = inlined_call_operand.vmem [shape: f32[3,8,4], index: 2, kind: input, shape index: {}]
  %s3 = inlined_call_operand.vmem [shape: f32[8,1], index: 3, kind: input, shape index: {}]
  %s4 = inlined_call_operand.hbm [shape: f32[2,8,8,8], index: 4, kind: output, shape index: {}]
  %s5 = sld [smem:[#allocation0]]
  $region49: #{tpu_custom_call.1} parent=0
    _
  %s7 = ssub.s32 1, %s5
  %s8 = scalar_select 0, %s7, %s5
  $region1: #{tpu_custom_call.1} parent=0
    #allocation2 [shape = 'u8[65536]{0}', space=vmem, size = 0x10000, scoped, tag = 'output window, operand 0']
    #allocation3 [shape = 's32[2]{0}', space=sflag, size = 0x8, scoped, tag = 'scoped memory for tpu_custom_call.1']
    %9 = vsyncpa [#allocation3], 0
    %s10 = scalar_lea.sflag [#allocation3], 1
    %11 = vsyncpa %s10, 0
    loop: start=0, step=1, limit=4
    $region2: #{tpu_custom_call.1} parent=1 // loop_pre_header
      _
    $region3: #{tpu_custom_call.1} parent=1 // loop_header
      %s13 = sphi 0, %s17
      %p14 = scmp.ge.s32.totalorder %s13, 4
      %s23 = sphi 0, %s25
      %s26 = sphi 0, %s23
      %s27 = sphi 0, %s26
      %s43 = sphi 0, %s27
      %s47 = sphi 0, %s47
      %s49 = sphi 0, %s47
      %s50 = sphi 0, %s49
      %s64 = sphi 0, %s50
      %s68 = sphi 0, %s68
      %s70 = sphi 0, %s68
      %s71 = sphi 0, %s70
      %s85 = sphi 0, %s71
      %s89 = sphi 0, %s89
      %s91 = sphi 0, %s89
      %s92 = sphi 0, %s91
      %s106 = sphi 0, %s92
      %s112 = sphi 0, %s114
      %s115 = sphi 0, %s112
      %s116 = sphi 0, %s115
      %s132 = sphi 0, %s116
    $region4: #{tpu_custom_call.1} parent=1 // loop_header_branch
      %16 = sbr.rel (%p14) target = $region8
    $region5: #{tpu_custom_call.1} parent=1 // loop_body
      %s18 = ssub.s32 %s13, 1
      %s19 = ssub.s32 %s13, 2
      %s20 = sadd.s32 %s13, 1
      %s21 = ssub.s32 %s13, %s20
      %p22 = scmp.eq.s32.totalorder %s21, 0
      %s24 = sadd.s32 %s23, 1
      %s25 = scalar_select %p22, %s23, %s24
      %p28 = pneg %p22
      %p29 = scmp.eq.s32.totalorder %s13, 1
      %p30 = por %p28, %p29
      %p31 = scmp.ne.s32.totalorder %s23, %s26
      %p32 = scmp.eq.s32.totalorder %s13, 0
      %p33 = por %p31, %p32
      %p34 = scmp.ne.s32.totalorder %s23, %s26
      %p35 = scmp.eq.s32.totalorder %s18, 1
      %p36 = por %p34, %p35
      %p37 = scmp.ne.s32.totalorder %s26, %s27
      %p38 = scmp.eq.s32.totalorder %s18, 0
      %p39 = por %p37, %p38
      %p40 = scmp.ne.s32.totalorder %s26, %s27
      %p41 = scmp.eq.s32.totalorder %s19, 1
      %p42 = por %p40, %p41
      %p44 = scmp.ne.s32.totalorder %s27, %s43
      %p45 = scmp.eq.s32.totalorder %s19, 0
      %p46 = por %p44, %p45
      %s48 = sadd.s32 %s47, 1
      %p51 = scmp.eq.s32.totalorder %s13, 1
      %p52 = scmp.ne.s32.totalorder %s47, %s49
      %p53 = scmp.eq.s32.totalorder %s13, 0
      %p54 = por %p52, %p53
      %p55 = scmp.ne.s32.totalorder %s47, %s49
      %p56 = scmp.eq.s32.totalorder %s18, 1
      %p57 = por %p55, %p56
      %p58 = scmp.ne.s32.totalorder %s49, %s50
      %p59 = scmp.eq.s32.totalorder %s18, 0
      %p60 = por %p58, %p59
      %p61 = scmp.ne.s32.totalorder %s49, %s50
      %p62 = scmp.eq.s32.totalorder %s19, 1
      %p63 = por %p61, %p62
      %p65 = scmp.ne.s32.totalorder %s50, %s64
      %p66 = scmp.eq.s32.totalorder %s19, 0
      %p67 = por %p65, %p66
      %s69 = sadd.s32 %s68, 1
      %p72 = scmp.eq.s32.totalorder %s13, 1
      %p73 = scmp.ne.s32.totalorder %s68, %s70
      %p74 = scmp.eq.s32.totalorder %s13, 0
      %p75 = por %p73, %p74
      %p76 = scmp.ne.s32.totalorder %s68, %s70
      %p77 = scmp.eq.s32.totalorder %s18, 1
      %p78 = por %p76, %p77
      %p79 = scmp.ne.s32.totalorder %s70, %s71
      %p80 = scmp.eq.s32.totalorder %s18, 0
      %p81 = por %p79, %p80
      %p82 = scmp.ne.s32.totalorder %s70, %s71
      %p83 = scmp.eq.s32.totalorder %s19, 1
      %p84 = por %p82, %p83
      %p86 = scmp.ne.s32.totalorder %s71, %s85
      %p87 = scmp.eq.s32.totalorder %s19, 0
      %p88 = por %p86, %p87
      %s90 = sadd.s32 %s89, 1
      %p93 = scmp.eq.s32.totalorder %s13, 1
      %p94 = scmp.ne.s32.totalorder %s89, %s91
      %p95 = scmp.eq.s32.totalorder %s13, 0
      %p96 = por %p94, %p95
      %p97 = scmp.ne.s32.totalorder %s89, %s91
      %p98 = scmp.eq.s32.totalorder %s18, 1
      %p99 = por %p97, %p98
      %p100 = scmp.ne.s32.totalorder %s91, %s92
      %p101 = scmp.eq.s32.totalorder %s18, 0
      %p102 = por %p100, %p101
      %p103 = scmp.ne.s32.totalorder %s91, %s92
      %p104 = scmp.eq.s32.totalorder %s19, 1
      %p105 = por %p103, %p104
      %p107 = scmp.ne.s32.totalorder %s92, %s106
      %p108 = scmp.eq.s32.totalorder %s19, 0
      %p109 = por %p107, %p108
      %s110 = ssub.s32 %s13, %s20
      %p111 = scmp.eq.s32.totalorder %s110, 0
      %s113 = sadd.s32 %s112, 1
      %s114 = scalar_select %p111, %s112, %s113
      %p117 = pneg %p111
      %p118 = scmp.eq.s32.totalorder %s13, 1
      %p119 = por %p117, %p118
      %p120 = scmp.ne.s32.totalorder %s112, %s115
      %p121 = scmp.eq.s32.totalorder %s13, 0
      %p122 = por %p120, %p121
      %p123 = scmp.ne.s32.totalorder %s112, %s115
      %p124 = scmp.eq.s32.totalorder %s18, 1
      %p125 = por %p123, %p124
      %p126 = scmp.ne.s32.totalorder %s115, %s116
      %p127 = scmp.eq.s32.totalorder %s18, 0
      %p128 = por %p126, %p127
      %p129 = scmp.ne.s32.totalorder %s115, %s116
      %p130 = scmp.eq.s32.totalorder %s19, 1
      %p131 = por %p129, %p130
      %p133 = scmp.ne.s32.totalorder %s116, %s132
      %p134 = scmp.eq.s32.totalorder %s19, 0
      %p135 = por %p133, %p134
      %p136 = scmp.le.s32.totalorder 1, %s13
      %p137 = scmp.lt.s32.totalorder %s13, 3
      %p138 = pnand %p136, %p137
      %p139 = pneg %p138
      // Predicated region
      $region9: #{tpu_custom_call.1} parent=5 // pred_check
        _
      $region10: #{tpu_custom_call.1} parent=5 // pred_check_branch
        %141 = sbr.rel (%p138) target = $region12
      $region11: #{tpu_custom_call.1} parent=5 // pred_region
        %s142 = ssub.s32 %s13, 1
        // Predicated region
        $region13: #{tpu_custom_call.1} parent=11 // pred_check
          %p143 = pneg %p60
        $region14: #{tpu_custom_call.1} parent=11 // pred_check_branch
          %145 = sbr.rel (%p143) target = $region16
        $region15: #{tpu_custom_call.1} parent=11 // pred_region
          _
        $region16: #{tpu_custom_call.1} parent=11 // pred_fallthru
          _
        // Predicated region
        $region17: #{tpu_custom_call.1} parent=11 // pred_check
          %p146 = pneg %p81
        $region18: #{tpu_custom_call.1} parent=11 // pred_check_branch
          %148 = sbr.rel (%p146) target = $region20
        $region19: #{tpu_custom_call.1} parent=11 // pred_region
          _
        $region20: #{tpu_custom_call.1} parent=11 // pred_fallthru
          _
        // Predicated region
        $region21: #{tpu_custom_call.1} parent=11 // pred_check
          %p149 = pneg %p102
        $region22: #{tpu_custom_call.1} parent=11 // pred_check_branch
          %151 = sbr.rel (%p149) target = $region24
        $region23: #{tpu_custom_call.1} parent=11 // pred_region
          _
        $region24: #{tpu_custom_call.1} parent=11 // pred_fallthru
          _
      $region12: #{tpu_custom_call.1} parent=5 // pred_fallthru
        _
      %p152 = scmp.lt.s32.totalorder %s13, 2
      // Predicated region
      $region25: #{tpu_custom_call.1} parent=5 // pred_check
        %p153 = pneg %p152
      $region26: #{tpu_custom_call.1} parent=5 // pred_check_branch
        %155 = sbr.rel (%p153) target = $region28
      $region27: #{tpu_custom_call.1} parent=5 // pred_region
        // Predicated region
        $region29: #{tpu_custom_call.1} parent=27 // pred_check
          %p156 = pneg %p33
        $region30: #{tpu_custom_call.1} parent=27 // pred_check_branch
          %158 = sbr.rel (%p156) target = $region32
        $region31: #{tpu_custom_call.1} parent=27 // pred_region
          %p159 = scmp.lt.s32.totalorder %s13, 1
          %s160 = scalar_select %p159, %s13, 1
          %s161 = smul.addr %s160, 18
          %s162 = smul.addr %s161, 8
          %s163 = scalar_lea.vmem %s0, %s162
        $region32: #{tpu_custom_call.1} parent=27 // pred_fallthru
          _
      $region28: #{tpu_custom_call.1} parent=5 // pred_fallthru
        _
      %p164 = scmp.le.s32.totalorder 1, %s13
      %p165 = scmp.lt.s32.totalorder %s13, 3
      %p166 = pnand %p164, %p165
      %p167 = pneg %p166
      // Predicated region
      $region33: #{tpu_custom_call.1} parent=5 // pred_check
        _
      $region34: #{tpu_custom_call.1} parent=5 // pred_check_branch
        %169 = sbr.rel (%p166) target = $region36
      $region35: #{tpu_custom_call.1} parent=5 // pred_region
        %s170 = ssub.s32 %s13, 1
        %p171 = scmp.lt.s32.totalorder %s18, 1
        %s172 = scalar_select %p171, %s18, 1
        %s173 = smul.addr %s172, 18
        %s174 = smul.addr %s173, 8
        %s175 = scalar_lea.vmem %s0, %s174
        %p176 = pneg %p39
        %p177 = pneg %p36
        %p178 = pneg %p60
        %p179 = pneg %p57
        %p180 = pneg %p81
        %p181 = pneg %p78
        %p182 = pneg %p102
        %p183 = pneg %p99
        %p184 = pneg %p128
        %p185 = pneg %p125
        %s186 = sand.u32 %s115, 1
        %s187 = scalar_lea.sflag [#allocation3], %s186
        %s188 = sand.u32 %s115, 1
        %s189 = smul.addr %s188, 64
        %s190 = scalar_lea.vmem [#allocation2], %s189
        %p191 = scmp.lt.s32.totalorder %s18, 1
        %s192 = scalar_select %p191, %s18, 1
        %s193 = smul.addr %s192, 18
        %s194 = smul.addr %s193, 8
        %s195 = scalar_lea.vmem %s0, %s194
        %v196 = vld [vmem:[%s3] sm:$0xff]
        %v197 = vld [vmem:[%s195] sm:$0xff]
        %v198 = vld [vmem:[%s1] sm:$0xff]
        %v199 = vld [vmem:[%s2] sm:$0xff]
        %201 = vrot.lane.b32.xlu0 %v197, 127
        %v202 = vpop.permute.xlu0 %201
        %vm203 = vcmask 31744
        %v205 = vsel %vm203, %v199, 0
        %vm207 = vcmask 1043456
        %v208 = vsel %vm207, %v202, 0
        %210 = vmatpush.msra.mxu0 0.0
        %211 = vmatpush.msra.mxu0 0.0
        %212 = vmatpush.msra.mxu0 0.0
        %213 = vmatpush.msra.mxu0 0.0
        %214 = vmatpush.msra.mxu0 0.0
        %215 = vmatpush.msra.mxu0 0.0
        %216 = vmatpush.msra.mxu0 0.0
        %217 = vmatpush.msra.mxu0 0.0
        %218 = vmatpush.msra.mxu0 0.0
        %219 = vmatpush.msra.mxu0 0.0
        %220 = vmatpush.msra.mxu0 0.0
        %221 = vmatpush.msra.mxu0 0.0
        %222 = vmatpush.msra.mxu0 0.0
        %223 = vmatpush.msra.mxu0 0.0
        %224 = vmatpush.msra.mxu0 0.0
        %225 = vmatpush.msra.mxu0 %v208
        %226 = vmatmul.f32.gmra.mxu0 %v205
        %v227 = vpop.f32.mrf.mxu0
        %v228 = vadd.f32 0.0, %v227
        %229 = vdwg.mxu0
        %vm230 = vcmask 64512
        %v232 = vsel %vm230, %v198, 0
        %234 = vmatpush.msra.mxu0 0.0
        %235 = vmatpush.msra.mxu0 0.0
        %236 = vmatpush.msra.mxu0 0.0
        %237 = vmatpush.msra.mxu0 0.0
        %238 = vmatpush.msra.mxu0 0.0
        %239 = vmatpush.msra.mxu0 0.0
        %240 = vmatpush.msra.mxu0 0.0
        %241 = vmatpush.msra.mxu0 0.0
        %242 = vmatpush.msra.mxu0 0.0
        %243 = vmatpush.msra.mxu0 0.0
        %244 = vmatpush.msra.mxu0 0.0
        %245 = vmatpush.msra.mxu0 0.0
        %246 = vmatpush.msra.mxu0 0.0
        %247 = vmatpush.msra.mxu0 0.0
        %248 = vmatpush.msra.mxu0 0.0
        %249 = vmatpush.msra.mxu0 %v197
        %250 = vmatmul.f32.gmra.mxu0 %v232
        %v251 = vpop.f32.mrf.mxu0
        %v252 = vadd.f32 %v228, %v251
        %253 = vdwg.mxu0
        %s254 = scalar_lea.vmem %s195, 8
        %v255 = vld [vmem:[%s254] sm:$0xff]
        %s256 = scalar_lea.vmem %s1, 8
        %v257 = vld [vmem:[%s256] sm:$0xff]
        %v259 = vsel %vm230, %v257, 0
        %261 = vmatpush.msra.mxu0 0.0
        %262 = vmatpush.msra.mxu0 0.0
        %263 = vmatpush.msra.mxu0 0.0
        %264 = vmatpush.msra.mxu0 0.0
        %265 = vmatpush.msra.mxu0 0.0
        %266 = vmatpush.msra.mxu0 0.0
        %267 = vmatpush.msra.mxu0 0.0
        %268 = vmatpush.msra.mxu0 0.0
        %269 = vmatpush.msra.mxu0 0.0
        %270 = vmatpush.msra.mxu0 0.0
        %271 = vmatpush.msra.mxu0 0.0
        %272 = vmatpush.msra.mxu0 0.0
        %273 = vmatpush.msra.mxu0 0.0
        %274 = vmatpush.msra.mxu0 0.0
        %275 = vmatpush.msra.mxu0 0.0
        %276 = vmatpush.msra.mxu0 %v255
        %277 = vmatmul.f32.gmra.mxu0 %v259
        %v278 = vpop.f32.mrf.mxu0
        %v279 = vadd.f32 0.0, %v278
        %280 = vdwg.mxu0
        %v281 = vadd.f32 %v252, %v279
        %s282 = scalar_lea.vmem %s2, 8
        %v283 = vld [vmem:[%s282] sm:$0xff]
        %285 = vrot.lane.b32.xlu0 %v255, 127
        %v286 = vpop.permute.xlu0 %285
        %v288 = vsel %vm203, %v283, 0
        %v290 = vsel %vm207, %v286, 0
        %292 = vmatpush.msra.mxu0 0.0
        %293 = vmatpush.msra.mxu0 0.0
        %294 = vmatpush.msra.mxu0 0.0
        %295 = vmatpush.msra.mxu0 0.0
        %296 = vmatpush.msra.mxu0 0.0
        %297 = vmatpush.msra.mxu0 0.0
        %298 = vmatpush.msra.mxu0 0.0
        %299 = vmatpush.msra.mxu0 0.0
        %300 = vmatpush.msra.mxu0 0.0
        %301 = vmatpush.msra.mxu0 0.0
        %302 = vmatpush.msra.mxu0 0.0
        %303 = vmatpush.msra.mxu0 0.0
        %304 = vmatpush.msra.mxu0 0.0
        %305 = vmatpush.msra.mxu0 0.0
        %306 = vmatpush.msra.mxu0 0.0
        %307 = vmatpush.msra.mxu0 %v290
        %308 = vmatmul.f32.gmra.mxu0 %v288
        %v309 = vpop.f32.mrf.mxu0
        %v310 = vadd.f32 0.0, %v309
        %311 = vdwg.mxu0
        %v312 = vadd.f32 %v281, %v310
        %s313 = scalar_lea.vmem %s195, 16
        %v314 = vld [vmem:[%s313] sm:$0xff]
        %s315 = scalar_lea.vmem %s1, 16
        %v316 = vld [vmem:[%s315] sm:$0xff]
        %v318 = vsel %vm230, %v316, 0
        %320 = vmatpush.msra.mxu0 0.0
        %321 = vmatpush.msra.mxu0 0.0
        %322 = vmatpush.msra.mxu0 0.0
        %323 = vmatpush.msra.mxu0 0.0
        %324 = vmatpush.msra.mxu0 0.0
        %325 = vmatpush.msra.mxu0 0.0
        %326 = vmatpush.msra.mxu0 0.0
        %327 = vmatpush.msra.mxu0 0.0
        %328 = vmatpush.msra.mxu0 0.0
        %329 = vmatpush.msra.mxu0 0.0
        %330 = vmatpush.msra.mxu0 0.0
        %331 = vmatpush.msra.mxu0 0.0
        %332 = vmatpush.msra.mxu0 0.0
        %333 = vmatpush.msra.mxu0 0.0
        %334 = vmatpush.msra.mxu0 0.0
        %335 = vmatpush.msra.mxu0 %v314
        %336 = vmatmul.f32.gmra.mxu0 %v318
        %v337 = vpop.f32.mrf.mxu0
        %v338 = vadd.f32 0.0, %v337
        %339 = vdwg.mxu0
        %v340 = vadd.f32 %v312, %v338
        %s341 = scalar_lea.vmem %s2, 16
        %v342 = vld [vmem:[%s341] sm:$0xff]
        %344 = vrot.lane.b32.xlu0 %v314, 127
        %v345 = vpop.permute.xlu0 %344
        %v347 = vsel %vm203, %v342, 0
        %v349 = vsel %vm207, %v345, 0
        %351 = vmatpush.msra.mxu0 0.0
        %352 = vmatpush.msra.mxu0 0.0
        %353 = vmatpush.msra.mxu0 0.0
        %354 = vmatpush.msra.mxu0 0.0
        %355 = vmatpush.msra.mxu0 0.0
        %356 = vmatpush.msra.mxu0 0.0
        %357 = vmatpush.msra.mxu0 0.0
        %358 = vmatpush.msra.mxu0 0.0
        %359 = vmatpush.msra.mxu0 0.0
        %360 = vmatpush.msra.mxu0 0.0
        %361 = vmatpush.msra.mxu0 0.0
        %362 = vmatpush.msra.mxu0 0.0
        %363 = vmatpush.msra.mxu0 0.0
        %364 = vmatpush.msra.mxu0 0.0
        %365 = vmatpush.msra.mxu0 0.0
        %366 = vmatpush.msra.mxu0 %v349
        %367 = vmatmul.f32.gmra.mxu0 %v347
        %v368 = vpop.f32.mrf.mxu0
        %v369 = vadd.f32 0.0, %v368
        %370 = vdwg.mxu0
        %v371 = vadd.f32 %v340, %v369
        %373 = vset.pattern.permute.xlu0 0
        %374 = vperm.xlu0 %373, %v196
        %v375 = vpop.permute.xlu0 %374
        %v377 = vadd.f32 %v371, %v375
        %vm378 = vcmp.gt.f32.partialorder %v377, 0.0
        %v379 = vmin.f32 %v377, 0.0
        %v380 = vmul.f32 %v379, 1.442695
        %v381 = vpow.pop %v380
        %v382 = vsub.f32 %v381, 1.0
        %v383 = vsel %vm378, %v377, %v382
        %v385 = vrot.slane %v383, 1
        %v386 = vrot.slane %v383, 2
        %v387 = vrot.slane %v383, 3
        %v388 = vrot.slane %v383, 4
        %v389 = vrot.slane %v383, 5
        %v390 = vrot.slane %v383, 6
        %v391 = vrot.slane %v383, 7
        %vm399 = vcmask 57344
        %400 = vst.msk [vmem:[%s190] sm:$0x1] %vm399, %v383
        %401 = vst.msk [vmem:[%s190 + $0x8] sm:$0x1] %vm399, %v385
        %402 = vst.msk [vmem:[%s190 + $0x10] sm:$0x1] %vm399, %v386
        %403 = vst.msk [vmem:[%s190 + $0x18] sm:$0x1] %vm399, %v387
        %404 = vst.msk [vmem:[%s190 + $0x20] sm:$0x1] %vm399, %v388
        %405 = vst.msk [vmem:[%s190 + $0x28] sm:$0x1] %vm399, %v389
        %406 = vst.msk [vmem:[%s190 + $0x30] sm:$0x1] %vm399, %v390
        %407 = vst.msk [vmem:[%s190 + $0x38] sm:$0x1] %vm399, %v391
        %v408 = vld [vmem:[%s313] sm:$0xff]
        %v409 = vld [vmem:[%s1] sm:$0xff]
        %v410 = vld [vmem:[%s2] sm:$0xff]
        %412 = vrot.lane.b32.xlu0 %v408, 127
        %v413 = vpop.permute.xlu0 %412
        %v415 = vsel %vm203, %v410, 0
        %v417 = vsel %vm207, %v413, 0
        %419 = vmatpush.msra.mxu0 0.0
        %420 = vmatpush.msra.mxu0 0.0
        %421 = vmatpush.msra.mxu0 0.0
        %422 = vmatpush.msra.mxu0 0.0
        %423 = vmatpush.msra.mxu0 0.0
        %424 = vmatpush.msra.mxu0 0.0
        %425 = vmatpush.msra.mxu0 0.0
        %426 = vmatpush.msra.mxu0 0.0
        %427 = vmatpush.msra.mxu0 0.0
        %428 = vmatpush.msra.mxu0 0.0
        %429 = vmatpush.msra.mxu0 0.0
        %430 = vmatpush.msra.mxu0 0.0
        %431 = vmatpush.msra.mxu0 0.0
        %432 = vmatpush.msra.mxu0 0.0
        %433 = vmatpush.msra.mxu0 0.0
        %434 = vmatpush.msra.mxu0 %v417
        %435 = vmatmul.f32.gmra.mxu0 %v415
        %v436 = vpop.f32.mrf.mxu0
        %v437 = vadd.f32 0.0, %v436
        %438 = vdwg.mxu0
        %v440 = vsel %vm230, %v409, 0
        %442 = vmatpush.msra.mxu0 0.0
        %443 = vmatpush.msra.mxu0 0.0
        %444 = vmatpush.msra.mxu0 0.0
        %445 = vmatpush.msra.mxu0 0.0
        %446 = vmatpush.msra.mxu0 0.0
        %447 = vmatpush.msra.mxu0 0.0
        %448 = vmatpush.msra.mxu0 0.0
        %449 = vmatpush.msra.mxu0 0.0
        %450 = vmatpush.msra.mxu0 0.0
        %451 = vmatpush.msra.mxu0 0.0
        %452 = vmatpush.msra.mxu0 0.0
        %453 = vmatpush.msra.mxu0 0.0
        %454 = vmatpush.msra.mxu0 0.0
        %455 = vmatpush.msra.mxu0 0.0
        %456 = vmatpush.msra.mxu0 0.0
        %457 = vmatpush.msra.mxu0 %v408
        %458 = vmatmul.f32.gmra.mxu0 %v440
        %v459 = vpop.f32.mrf.mxu0
        %v460 = vadd.f32 %v437, %v459
        %461 = vdwg.mxu0
        %s462 = scalar_lea.vmem %s195, 24
        %v463 = vld [vmem:[%s462] sm:$0xff]
        %v464 = vld [vmem:[%s256] sm:$0xff]
        %v466 = vsel %vm230, %v464, 0
        %468 = vmatpush.msra.mxu0 0.0
        %469 = vmatpush.msra.mxu0 0.0
        %470 = vmatpush.msra.mxu0 0.0
        %471 = vmatpush.msra.mxu0 0.0
        %472 = vmatpush.msra.mxu0 0.0
        %473 = vmatpush.msra.mxu0 0.0
        %474 = vmatpush.msra.mxu0 0.0
        %475 = vmatpush.msra.mxu0 0.0
        %476 = vmatpush.msra.mxu0 0.0
        %477 = vmatpush.msra.mxu0 0.0
        %478 = vmatpush.msra.mxu0 0.0
        %479 = vmatpush.msra.mxu0 0.0
        %480 = vmatpush.msra.mxu0 0.0
        %481 = vmatpush.msra.mxu0 0.0
        %482 = vmatpush.msra.mxu0 0.0
        %483 = vmatpush.msra.mxu0 %v463
        %484 = vmatmul.f32.gmra.mxu0 %v466
        %v485 = vpop.f32.mrf.mxu0
        %v486 = vadd.f32 0.0, %v485
        %487 = vdwg.mxu0
        %v488 = vadd.f32 %v460, %v486
        %v489 = vld [vmem:[%s282] sm:$0xff]
        %491 = vrot.lane.b32.xlu0 %v463, 127
        %v492 = vpop.permute.xlu0 %491
        %v494 = vsel %vm203, %v489, 0
        %v496 = vsel %vm207, %v492, 0
        %498 = vmatpush.msra.mxu0 0.0
        %499 = vmatpush.msra.mxu0 0.0
        %500 = vmatpush.msra.mxu0 0.0
        %501 = vmatpush.msra.mxu0 0.0
        %502 = vmatpush.msra.mxu0 0.0
        %503 = vmatpush.msra.mxu0 0.0
        %504 = vmatpush.msra.mxu0 0.0
        %505 = vmatpush.msra.mxu0 0.0
        %506 = vmatpush.msra.mxu0 0.0
        %507 = vmatpush.msra.mxu0 0.0
        %508 = vmatpush.msra.mxu0 0.0
        %509 = vmatpush.msra.mxu0 0.0
        %510 = vmatpush.msra.mxu0 0.0
        %511 = vmatpush.msra.mxu0 0.0
        %512 = vmatpush.msra.mxu0 0.0
        %513 = vmatpush.msra.mxu0 %v496
        %514 = vmatmul.f32.gmra.mxu0 %v494
        %v515 = vpop.f32.mrf.mxu0
        %v516 = vadd.f32 0.0, %v515
        %517 = vdwg.mxu0
        %v518 = vadd.f32 %v488, %v516
        %s519 = scalar_lea.vmem %s195, 32
        %v520 = vld [vmem:[%s519] sm:$0xff]
        %v521 = vld [vmem:[%s315] sm:$0xff]
        %v523 = vsel %vm230, %v521, 0
        %525 = vmatpush.msra.mxu0 0.0
        %526 = vmatpush.msra.mxu0 0.0
        %527 = vmatpush.msra.mxu0 0.0
        %528 = vmatpush.msra.mxu0 0.0
        %529 = vmatpush.msra.mxu0 0.0
        %530 = vmatpush.msra.mxu0 0.0
        %531 = vmatpush.msra.mxu0 0.0
        %532 = vmatpush.msra.mxu0 0.0
        %533 = vmatpush.msra.mxu0 0.0
        %534 = vmatpush.msra.mxu0 0.0
        %535 = vmatpush.msra.mxu0 0.0
        %536 = vmatpush.msra.mxu0 0.0
        %537 = vmatpush.msra.mxu0 0.0
        %538 = vmatpush.msra.mxu0 0.0
        %539 = vmatpush.msra.mxu0 0.0
        %540 = vmatpush.msra.mxu0 %v520
        %541 = vmatmul.f32.gmra.mxu0 %v523
        %v542 = vpop.f32.mrf.mxu0
        %v543 = vadd.f32 0.0, %v542
        %544 = vdwg.mxu0
        %v545 = vadd.f32 %v518, %v543
        %v546 = vld [vmem:[%s341] sm:$0xff]
        %548 = vrot.lane.b32.xlu0 %v520, 127
        %v549 = vpop.permute.xlu0 %548
        %v551 = vsel %vm203, %v546, 0
        %v553 = vsel %vm207, %v549, 0
        %555 = vmatpush.msra.mxu0 0.0
        %556 = vmatpush.msra.mxu0 0.0
        %557 = vmatpush.msra.mxu0 0.0
        %558 = vmatpush.msra.mxu0 0.0
        %559 = vmatpush.msra.mxu0 0.0
        %560 = vmatpush.msra.mxu0 0.0
        %561 = vmatpush.msra.mxu0 0.0
        %562 = vmatpush.msra.mxu0 0.0
        %563 = vmatpush.msra.mxu0 0.0
        %564 = vmatpush.msra.mxu0 0.0
        %565 = vmatpush.msra.mxu0 0.0
        %566 = vmatpush.msra.mxu0 0.0
        %567 = vmatpush.msra.mxu0 0.0
        %568 = vmatpush.msra.mxu0 0.0
        %569 = vmatpush.msra.mxu0 0.0
        %570 = vmatpush.msra.mxu0 %v553
        %571 = vmatmul.f32.gmra.mxu0 %v551
        %v572 = vpop.f32.mrf.mxu0
        %v573 = vadd.f32 0.0, %v572
        %574 = vdwg.mxu0
        %v575 = vadd.f32 %v545, %v573
        %v576 = vadd.f32 %v575, %v375
        %vm577 = vcmp.gt.f32.partialorder %v576, 0.0
        %v578 = vmin.f32 %v576, 0.0
        %v579 = vmul.f32 %v578, 1.442695
        %v580 = vpow.pop %v579
        %v581 = vsub.f32 %v580, 1.0
        %v582 = vsel %vm577, %v576, %v581
        %v584 = vrot.slane %v582, 1
        %v585 = vrot.slane %v582, 2
        %v586 = vrot.slane %v582, 3
        %v587 = vrot.slane %v582, 4
        %v588 = vrot.slane %v582, 5
        %v589 = vrot.slane %v582, 6
        %v590 = vrot.slane %v582, 7
        %598 = vst.msk [vmem:[%s190 + $0x1] sm:$0x1] %vm399, %v582
        %599 = vst.msk [vmem:[%s190 + $0x9] sm:$0x1] %vm399, %v584
        %600 = vst.msk [vmem:[%s190 + $0x11] sm:$0x1] %vm399, %v585
        %601 = vst.msk [vmem:[%s190 + $0x19] sm:$0x1] %vm399, %v586
        %602 = vst.msk [vmem:[%s190 + $0x21] sm:$0x1] %vm399, %v587
        %603 = vst.msk [vmem:[%s190 + $0x29] sm:$0x1] %vm399, %v588
        %604 = vst.msk [vmem:[%s190 + $0x31] sm:$0x1] %vm399, %v589
        %605 = vst.msk [vmem:[%s190 + $0x39] sm:$0x1] %vm399, %v590
        %v606 = vld [vmem:[%s519] sm:$0xff]
        %v607 = vld [vmem:[%s1] sm:$0xff]
        %v608 = vld [vmem:[%s2] sm:$0xff]
        %610 = vrot.lane.b32.xlu0 %v606, 127
        %v611 = vpop.permute.xlu0 %610
        %v613 = vsel %vm203, %v608, 0
        %v615 = vsel %vm207, %v611, 0
        %617 = vmatpush.msra.mxu0 0.0
        %618 = vmatpush.msra.mxu0 0.0
        %619 = vmatpush.msra.mxu0 0.0
        %620 = vmatpush.msra.mxu0 0.0
        %621 = vmatpush.msra.mxu0 0.0
        %622 = vmatpush.msra.mxu0 0.0
        %623 = vmatpush.msra.mxu0 0.0
        %624 = vmatpush.msra.mxu0 0.0
        %625 = vmatpush.msra.mxu0 0.0
        %626 = vmatpush.msra.mxu0 0.0
        %627 = vmatpush.msra.mxu0 0.0
        %628 = vmatpush.msra.mxu0 0.0
        %629 = vmatpush.msra.mxu0 0.0
        %630 = vmatpush.msra.mxu0 0.0
        %631 = vmatpush.msra.mxu0 0.0
        %632 = vmatpush.msra.mxu0 %v615
        %633 = vmatmul.f32.gmra.mxu0 %v613
        %v634 = vpop.f32.mrf.mxu0
        %v635 = vadd.f32 0.0, %v634
        %636 = vdwg.mxu0
        %v638 = vsel %vm230, %v607, 0
        %640 = vmatpush.msra.mxu0 0.0
        %641 = vmatpush.msra.mxu0 0.0
        %642 = vmatpush.msra.mxu0 0.0
        %643 = vmatpush.msra.mxu0 0.0
        %644 = vmatpush.msra.mxu0 0.0
        %645 = vmatpush.msra.mxu0 0.0
        %646 = vmatpush.msra.mxu0 0.0
        %647 = vmatpush.msra.mxu0 0.0
        %648 = vmatpush.msra.mxu0 0.0
        %649 = vmatpush.msra.mxu0 0.0
        %650 = vmatpush.msra.mxu0 0.0
        %651 = vmatpush.msra.mxu0 0.0
        %652 = vmatpush.msra.mxu0 0.0
        %653 = vmatpush.msra.mxu0 0.0
        %654 = vmatpush.msra.mxu0 0.0
        %655 = vmatpush.msra.mxu0 %v606
        %656 = vmatmul.f32.gmra.mxu0 %v638
        %v657 = vpop.f32.mrf.mxu0
        %v658 = vadd.f32 %v635, %v657
        %659 = vdwg.mxu0
        %s660 = scalar_lea.vmem %s195, 40
        %v661 = vld [vmem:[%s660] sm:$0xff]
        %v662 = vld [vmem:[%s256] sm:$0xff]
        %v664 = vsel %vm230, %v662, 0
        %666 = vmatpush.msra.mxu0 0.0
        %667 = vmatpush.msra.mxu0 0.0
        %668 = vmatpush.msra.mxu0 0.0
        %669 = vmatpush.msra.mxu0 0.0
        %670 = vmatpush.msra.mxu0 0.0
        %671 = vmatpush.msra.mxu0 0.0
        %672 = vmatpush.msra.mxu0 0.0
        %673 = vmatpush.msra.mxu0 0.0
        %674 = vmatpush.msra.mxu0 0.0
        %675 = vmatpush.msra.mxu0 0.0
        %676 = vmatpush.msra.mxu0 0.0
        %677 = vmatpush.msra.mxu0 0.0
        %678 = vmatpush.msra.mxu0 0.0
        %679 = vmatpush.msra.mxu0 0.0
        %680 = vmatpush.msra.mxu0 0.0
        %681 = vmatpush.msra.mxu0 %v661
        %682 = vmatmul.f32.gmra.mxu0 %v664
        %v683 = vpop.f32.mrf.mxu0
        %v684 = vadd.f32 0.0, %v683
        %685 = vdwg.mxu0
        %v686 = vadd.f32 %v658, %v684
        %v687 = vld [vmem:[%s282] sm:$0xff]
        %689 = vrot.lane.b32.xlu0 %v661, 127
        %v690 = vpop.permute.xlu0 %689
        %v692 = vsel %vm203, %v687, 0
        %v694 = vsel %vm207, %v690, 0
        %696 = vmatpush.msra.mxu0 0.0
        %697 = vmatpush.msra.mxu0 0.0
        %698 = vmatpush.msra.mxu0 0.0
        %699 = vmatpush.msra.mxu0 0.0
        %700 = vmatpush.msra.mxu0 0.0
        %701 = vmatpush.msra.mxu0 0.0
        %702 = vmatpush.msra.mxu0 0.0
        %703 = vmatpush.msra.mxu0 0.0
        %704 = vmatpush.msra.mxu0 0.0
        %705 = vmatpush.msra.mxu0 0.0
        %706 = vmatpush.msra.mxu0 0.0
        %707 = vmatpush.msra.mxu0 0.0
        %708 = vmatpush.msra.mxu0 0.0
        %709 = vmatpush.msra.mxu0 0.0
        %710 = vmatpush.msra.mxu0 0.0
        %711 = vmatpush.msra.mxu0 %v694
        %712 = vmatmul.f32.gmra.mxu0 %v692
        %v713 = vpop.f32.mrf.mxu0
        %v714 = vadd.f32 0.0, %v713
        %715 = vdwg.mxu0
        %v716 = vadd.f32 %v686, %v714
        %s717 = scalar_lea.vmem %s195, 48
        %v718 = vld [vmem:[%s717] sm:$0xff]
        %v719 = vld [vmem:[%s315] sm:$0xff]
        %v721 = vsel %vm230, %v719, 0
        %723 = vmatpush.msra.mxu0 0.0
        %724 = vmatpush.msra.mxu0 0.0
        %725 = vmatpush.msra.mxu0 0.0
        %726 = vmatpush.msra.mxu0 0.0
        %727 = vmatpush.msra.mxu0 0.0
        %728 = vmatpush.msra.mxu0 0.0
        %729 = vmatpush.msra.mxu0 0.0
        %730 = vmatpush.msra.mxu0 0.0
        %731 = vmatpush.msra.mxu0 0.0
        %732 = vmatpush.msra.mxu0 0.0
        %733 = vmatpush.msra.mxu0 0.0
        %734 = vmatpush.msra.mxu0 0.0
        %735 = vmatpush.msra.mxu0 0.0
        %736 = vmatpush.msra.mxu0 0.0
        %737 = vmatpush.msra.mxu0 0.0
        %738 = vmatpush.msra.mxu0 %v718
        %739 = vmatmul.f32.gmra.mxu0 %v721
        %v740 = vpop.f32.mrf.mxu0
        %v741 = vadd.f32 0.0, %v740
        %742 = vdwg.mxu0
        %v743 = vadd.f32 %v716, %v741
        %v744 = vld [vmem:[%s341] sm:$0xff]
        %746 = vrot.lane.b32.xlu0 %v718, 127
        %v747 = vpop.permute.xlu0 %746
        %v749 = vsel %vm203, %v744, 0
        %v751 = vsel %vm207, %v747, 0
        %753 = vmatpush.msra.mxu0 0.0
        %754 = vmatpush.msra.mxu0 0.0
        %755 = vmatpush.msra.mxu0 0.0
        %756 = vmatpush.msra.mxu0 0.0
        %757 = vmatpush.msra.mxu0 0.0
        %758 = vmatpush.msra.mxu0 0.0
        %759 = vmatpush.msra.mxu0 0.0
        %760 = vmatpush.msra.mxu0 0.0
        %761 = vmatpush.msra.mxu0 0.0
        %762 = vmatpush.msra.mxu0 0.0
        %763 = vmatpush.msra.mxu0 0.0
        %764 = vmatpush.msra.mxu0 0.0
        %765 = vmatpush.msra.mxu0 0.0
        %766 = vmatpush.msra.mxu0 0.0
        %767 = vmatpush.msra.mxu0 0.0
        %768 = vmatpush.msra.mxu0 %v751
        %769 = vmatmul.f32.gmra.mxu0 %v749
        %v770 = vpop.f32.mrf.mxu0
        %v771 = vadd.f32 0.0, %v770
        %772 = vdwg.mxu0
        %v773 = vadd.f32 %v743, %v771
        %v774 = vadd.f32 %v773, %v375
        %vm775 = vcmp.gt.f32.partialorder %v774, 0.0
        %v776 = vmin.f32 %v774, 0.0
        %v777 = vmul.f32 %v776, 1.442695
        %v778 = vpow.pop %v777
        %v779 = vsub.f32 %v778, 1.0
        %v780 = vsel %vm775, %v774, %v779
        %v782 = vrot.slane %v780, 1
        %v783 = vrot.slane %v780, 2
        %v784 = vrot.slane %v780, 3
        %v785 = vrot.slane %v780, 4
        %v786 = vrot.slane %v780, 5
        %v787 = vrot.slane %v780, 6
        %v788 = vrot.slane %v780, 7
        %796 = vst.msk [vmem:[%s190 + $0x2] sm:$0x1] %vm399, %v780
        %797 = vst.msk [vmem:[%s190 + $0xa] sm:$0x1] %vm399, %v782
        %798 = vst.msk [vmem:[%s190 + $0x12] sm:$0x1] %vm399, %v783
        %799 = vst.msk [vmem:[%s190 + $0x1a] sm:$0x1] %vm399, %v784
        %800 = vst.msk [vmem:[%s190 + $0x22] sm:$0x1] %vm399, %v785
        %801 = vst.msk [vmem:[%s190 + $0x2a] sm:$0x1] %vm399, %v786
        %802 = vst.msk [vmem:[%s190 + $0x32] sm:$0x1] %vm399, %v787
        %803 = vst.msk [vmem:[%s190 + $0x3a] sm:$0x1] %vm399, %v788
        %v804 = vld [vmem:[%s717] sm:$0xff]
        %v805 = vld [vmem:[%s1] sm:$0xff]
        %v806 = vld [vmem:[%s2] sm:$0xff]
        %808 = vrot.lane.b32.xlu0 %v804, 127
        %v809 = vpop.permute.xlu0 %808
        %v811 = vsel %vm203, %v806, 0
        %v813 = vsel %vm207, %v809, 0
        %815 = vmatpush.msra.mxu0 0.0
        %816 = vmatpush.msra.mxu0 0.0
        %817 = vmatpush.msra.mxu0 0.0
        %818 = vmatpush.msra.mxu0 0.0
        %819 = vmatpush.msra.mxu0 0.0
        %820 = vmatpush.msra.mxu0 0.0
        %821 = vmatpush.msra.mxu0 0.0
        %822 = vmatpush.msra.mxu0 0.0
        %823 = vmatpush.msra.mxu0 0.0
        %824 = vmatpush.msra.mxu0 0.0
        %825 = vmatpush.msra.mxu0 0.0
        %826 = vmatpush.msra.mxu0 0.0
        %827 = vmatpush.msra.mxu0 0.0
        %828 = vmatpush.msra.mxu0 0.0
        %829 = vmatpush.msra.mxu0 0.0
        %830 = vmatpush.msra.mxu0 %v813
        %831 = vmatmul.f32.gmra.mxu0 %v811
        %v832 = vpop.f32.mrf.mxu0
        %v833 = vadd.f32 0.0, %v832
        %834 = vdwg.mxu0
        %v836 = vsel %vm230, %v805, 0
        %838 = vmatpush.msra.mxu0 0.0
        %839 = vmatpush.msra.mxu0 0.0
        %840 = vmatpush.msra.mxu0 0.0
        %841 = vmatpush.msra.mxu0 0.0
        %842 = vmatpush.msra.mxu0 0.0
        %843 = vmatpush.msra.mxu0 0.0
        %844 = vmatpush.msra.mxu0 0.0
        %845 = vmatpush.msra.mxu0 0.0
        %846 = vmatpush.msra.mxu0 0.0
        %847 = vmatpush.msra.mxu0 0.0
        %848 = vmatpush.msra.mxu0 0.0
        %849 = vmatpush.msra.mxu0 0.0
        %850 = vmatpush.msra.mxu0 0.0
        %851 = vmatpush.msra.mxu0 0.0
        %852 = vmatpush.msra.mxu0 0.0
        %853 = vmatpush.msra.mxu0 %v804
        %854 = vmatmul.f32.gmra.mxu0 %v836
        %v855 = vpop.f32.mrf.mxu0
        %v856 = vadd.f32 %v833, %v855
        %857 = vdwg.mxu0
        %s858 = scalar_lea.vmem %s195, 56
        %v859 = vld [vmem:[%s858] sm:$0xff]
        %v860 = vld [vmem:[%s256] sm:$0xff]
        %v862 = vsel %vm230, %v860, 0
        %864 = vmatpush.msra.mxu0 0.0
        %865 = vmatpush.msra.mxu0 0.0
        %866 = vmatpush.msra.mxu0 0.0
        %867 = vmatpush.msra.mxu0 0.0
        %868 = vmatpush.msra.mxu0 0.0
        %869 = vmatpush.msra.mxu0 0.0
        %870 = vmatpush.msra.mxu0 0.0
        %871 = vmatpush.msra.mxu0 0.0
        %872 = vmatpush.msra.mxu0 0.0
        %873 = vmatpush.msra.mxu0 0.0
        %874 = vmatpush.msra.mxu0 0.0
        %875 = vmatpush.msra.mxu0 0.0
        %876 = vmatpush.msra.mxu0 0.0
        %877 = vmatpush.msra.mxu0 0.0
        %878 = vmatpush.msra.mxu0 0.0
        %879 = vmatpush.msra.mxu0 %v859
        %880 = vmatmul.f32.gmra.mxu0 %v862
        %v881 = vpop.f32.mrf.mxu0
        %v882 = vadd.f32 0.0, %v881
        %883 = vdwg.mxu0
        %v884 = vadd.f32 %v856, %v882
        %v885 = vld [vmem:[%s282] sm:$0xff]
        %887 = vrot.lane.b32.xlu0 %v859, 127
        %v888 = vpop.permute.xlu0 %887
        %v890 = vsel %vm203, %v885, 0
        %v892 = vsel %vm207, %v888, 0
        %894 = vmatpush.msra.mxu0 0.0
        %895 = vmatpush.msra.mxu0 0.0
        %896 = vmatpush.msra.mxu0 0.0
        %897 = vmatpush.msra.mxu0 0.0
        %898 = vmatpush.msra.mxu0 0.0
        %899 = vmatpush.msra.mxu0 0.0
        %900 = vmatpush.msra.mxu0 0.0
        %901 = vmatpush.msra.mxu0 0.0
        %902 = vmatpush.msra.mxu0 0.0
        %903 = vmatpush.msra.mxu0 0.0
        %904 = vmatpush.msra.mxu0 0.0
        %905 = vmatpush.msra.mxu0 0.0
        %906 = vmatpush.msra.mxu0 0.0
        %907 = vmatpush.msra.mxu0 0.0
        %908 = vmatpush.msra.mxu0 0.0
        %909 = vmatpush.msra.mxu0 %v892
        %910 = vmatmul.f32.gmra.mxu0 %v890
        %v911 = vpop.f32.mrf.mxu0
        %v912 = vadd.f32 0.0, %v911
        %913 = vdwg.mxu0
        %v914 = vadd.f32 %v884, %v912
        %s915 = scalar_lea.vmem %s195, 64
        %v916 = vld [vmem:[%s915] sm:$0xff]
        %v917 = vld [vmem:[%s315] sm:$0xff]
        %v919 = vsel %vm230, %v917, 0
        %921 = vmatpush.msra.mxu0 0.0
        %922 = vmatpush.msra.mxu0 0.0
        %923 = vmatpush.msra.mxu0 0.0
        %924 = vmatpush.msra.mxu0 0.0
        %925 = vmatpush.msra.mxu0 0.0
        %926 = vmatpush.msra.mxu0 0.0
        %927 = vmatpush.msra.mxu0 0.0
        %928 = vmatpush.msra.mxu0 0.0
        %929 = vmatpush.msra.mxu0 0.0
        %930 = vmatpush.msra.mxu0 0.0
        %931 = vmatpush.msra.mxu0 0.0
        %932 = vmatpush.msra.mxu0 0.0
        %933 = vmatpush.msra.mxu0 0.0
        %934 = vmatpush.msra.mxu0 0.0
        %935 = vmatpush.msra.mxu0 0.0
        %936 = vmatpush.msra.mxu0 %v916
        %937 = vmatmul.f32.gmra.mxu0 %v919
        %v938 = vpop.f32.mrf.mxu0
        %v939 = vadd.f32 0.0, %v938
        %940 = vdwg.mxu0
        %v941 = vadd.f32 %v914, %v939
        %v942 = vld [vmem:[%s341] sm:$0xff]
        %944 = vrot.lane.b32.xlu0 %v916, 127
        %v945 = vpop.permute.xlu0 %944
        %v947 = vsel %vm203, %v942, 0
        %v949 = vsel %vm207, %v945, 0
        %951 = vmatpush.msra.mxu0 0.0
        %952 = vmatpush.msra.mxu0 0.0
        %953 = vmatpush.msra.mxu0 0.0
        %954 = vmatpush.msra.mxu0 0.0
        %955 = vmatpush.msra.mxu0 0.0
        %956 = vmatpush.msra.mxu0 0.0
        %957 = vmatpush.msra.mxu0 0.0
        %958 = vmatpush.msra.mxu0 0.0
        %959 = vmatpush.msra.mxu0 0.0
        %960 = vmatpush.msra.mxu0 0.0
        %961 = vmatpush.msra.mxu0 0.0
        %962 = vmatpush.msra.mxu0 0.0
        %963 = vmatpush.msra.mxu0 0.0
        %964 = vmatpush.msra.mxu0 0.0
        %965 = vmatpush.msra.mxu0 0.0
        %966 = vmatpush.msra.mxu0 %v949
        %967 = vmatmul.f32.gmra.mxu0 %v947
        %v968 = vpop.f32.mrf.mxu0
        %v969 = vadd.f32 0.0, %v968
        %970 = vdwg.mxu0
        %v971 = vadd.f32 %v941, %v969
        %v972 = vadd.f32 %v971, %v375
        %vm973 = vcmp.gt.f32.partialorder %v972, 0.0
        %v974 = vmin.f32 %v972, 0.0
        %v975 = vmul.f32 %v974, 1.442695
        %v976 = vpow.pop %v975
        %v977 = vsub.f32 %v976, 1.0
        %v978 = vsel %vm973, %v972, %v977
        %v980 = vrot.slane %v978, 1
        %v981 = vrot.slane %v978, 2
        %v982 = vrot.slane %v978, 3
        %v983 = vrot.slane %v978, 4
        %v984 = vrot.slane %v978, 5
        %v985 = vrot.slane %v978, 6
        %v986 = vrot.slane %v978, 7
        %994 = vst.msk [vmem:[%s190 + $0x3] sm:$0x1] %vm399, %v978
        %995 = vst.msk [vmem:[%s190 + $0xb] sm:$0x1] %vm399, %v980
        %996 = vst.msk [vmem:[%s190 + $0x13] sm:$0x1] %vm399, %v981
        %997 = vst.msk [vmem:[%s190 + $0x1b] sm:$0x1] %vm399, %v982
        %998 = vst.msk [vmem:[%s190 + $0x23] sm:$0x1] %vm399, %v983
        %999 = vst.msk [vmem:[%s190 + $0x2b] sm:$0x1] %vm399, %v984
        %1000 = vst.msk [vmem:[%s190 + $0x33] sm:$0x1] %vm399, %v985
        %1001 = vst.msk [vmem:[%s190 + $0x3b] sm:$0x1] %vm399, %v986
        %v1002 = vld [vmem:[%s915] sm:$0xff]
        %v1003 = vld [vmem:[%s1] sm:$0xff]
        %v1004 = vld [vmem:[%s2] sm:$0xff]
        %1006 = vrot.lane.b32.xlu0 %v1002, 127
        %v1007 = vpop.permute.xlu0 %1006
        %v1009 = vsel %vm203, %v1004, 0
        %v1011 = vsel %vm207, %v1007, 0
        %1013 = vmatpush.msra.mxu0 0.0
        %1014 = vmatpush.msra.mxu0 0.0
        %1015 = vmatpush.msra.mxu0 0.0
        %1016 = vmatpush.msra.mxu0 0.0
        %1017 = vmatpush.msra.mxu0 0.0
        %1018 = vmatpush.msra.mxu0 0.0
        %1019 = vmatpush.msra.mxu0 0.0
        %1020 = vmatpush.msra.mxu0 0.0
        %1021 = vmatpush.msra.mxu0 0.0
        %1022 = vmatpush.msra.mxu0 0.0
        %1023 = vmatpush.msra.mxu0 0.0
        %1024 = vmatpush.msra.mxu0 0.0
        %1025 = vmatpush.msra.mxu0 0.0
        %1026 = vmatpush.msra.mxu0 0.0
        %1027 = vmatpush.msra.mxu0 0.0
        %1028 = vmatpush.msra.mxu0 %v1011
        %1029 = vmatmul.f32.gmra.mxu0 %v1009
        %v1030 = vpop.f32.mrf.mxu0
        %v1031 = vadd.f32 0.0, %v1030
        %1032 = vdwg.mxu0
        %v1034 = vsel %vm230, %v1003, 0
        %1036 = vmatpush.msra.mxu0 0.0
        %1037 = vmatpush.msra.mxu0 0.0
        %1038 = vmatpush.msra.mxu0 0.0
        %1039 = vmatpush.msra.mxu0 0.0
        %1040 = vmatpush.msra.mxu0 0.0
        %1041 = vmatpush.msra.mxu0 0.0
        %1042 = vmatpush.msra.mxu0 0.0
        %1043 = vmatpush.msra.mxu0 0.0
        %1044 = vmatpush.msra.mxu0 0.0
        %1045 = vmatpush.msra.mxu0 0.0
        %1046 = vmatpush.msra.mxu0 0.0
        %1047 = vmatpush.msra.mxu0 0.0
        %1048 = vmatpush.msra.mxu0 0.0
        %1049 = vmatpush.msra.mxu0 0.0
        %1050 = vmatpush.msra.mxu0 0.0
        %1051 = vmatpush.msra.mxu0 %v1002
        %1052 = vmatmul.f32.gmra.mxu0 %v1034
        %v1053 = vpop.f32.mrf.mxu0
        %v1054 = vadd.f32 %v1031, %v1053
        %1055 = vdwg.mxu0
        %s1056 = scalar_lea.vmem %s195, 72
        %v1057 = vld [vmem:[%s1056] sm:$0xff]
        %v1058 = vld [vmem:[%s256] sm:$0xff]
        %v1060 = vsel %vm230, %v1058, 0
        %1062 = vmatpush.msra.mxu0 0.0
        %1063 = vmatpush.msra.mxu0 0.0
        %1064 = vmatpush.msra.mxu0 0.0
        %1065 = vmatpush.msra.mxu0 0.0
        %1066 = vmatpush.msra.mxu0 0.0
        %1067 = vmatpush.msra.mxu0 0.0
        %1068 = vmatpush.msra.mxu0 0.0
        %1069 = vmatpush.msra.mxu0 0.0
        %1070 = vmatpush.msra.mxu0 0.0
        %1071 = vmatpush.msra.mxu0 0.0
        %1072 = vmatpush.msra.mxu0 0.0
        %1073 = vmatpush.msra.mxu0 0.0
        %1074 = vmatpush.msra.mxu0 0.0
        %1075 = vmatpush.msra.mxu0 0.0
        %1076 = vmatpush.msra.mxu0 0.0
        %1077 = vmatpush.msra.mxu0 %v1057
        %1078 = vmatmul.f32.gmra.mxu0 %v1060
        %v1079 = vpop.f32.mrf.mxu0
        %v1080 = vadd.f32 0.0, %v1079
        %1081 = vdwg.mxu0
        %v1082 = vadd.f32 %v1054, %v1080
        %v1083 = vld [vmem:[%s282] sm:$0xff]
        %1085 = vrot.lane.b32.xlu0 %v1057, 127
        %v1086 = vpop.permute.xlu0 %1085
        %v1088 = vsel %vm203, %v1083, 0
        %v1090 = vsel %vm207, %v1086, 0
        %1092 = vmatpush.msra.mxu0 0.0
        %1093 = vmatpush.msra.mxu0 0.0
        %1094 = vmatpush.msra.mxu0 0.0
        %1095 = vmatpush.msra.mxu0 0.0
        %1096 = vmatpush.msra.mxu0 0.0
        %1097 = vmatpush.msra.mxu0 0.0
        %1098 = vmatpush.msra.mxu0 0.0
        %1099 = vmatpush.msra.mxu0 0.0
        %1100 = vmatpush.msra.mxu0 0.0
        %1101 = vmatpush.msra.mxu0 0.0
        %1102 = vmatpush.msra.mxu0 0.0
        %1103 = vmatpush.msra.mxu0 0.0
        %1104 = vmatpush.msra.mxu0 0.0
        %1105 = vmatpush.msra.mxu0 0.0
        %1106 = vmatpush.msra.mxu0 0.0
        %1107 = vmatpush.msra.mxu0 %v1090
        %1108 = vmatmul.f32.gmra.mxu0 %v1088
        %v1109 = vpop.f32.mrf.mxu0
        %v1110 = vadd.f32 0.0, %v1109
        %1111 = vdwg.mxu0
        %v1112 = vadd.f32 %v1082, %v1110
        %s1113 = scalar_lea.vmem %s195, 80
        %v1114 = vld [vmem:[%s1113] sm:$0xff]
        %v1115 = vld [vmem:[%s315] sm:$0xff]
        %v1117 = vsel %vm230, %v1115, 0
        %1119 = vmatpush.msra.mxu0 0.0
        %1120 = vmatpush.msra.mxu0 0.0
        %1121 = vmatpush.msra.mxu0 0.0
        %1122 = vmatpush.msra.mxu0 0.0
        %1123 = vmatpush.msra.mxu0 0.0
        %1124 = vmatpush.msra.mxu0 0.0
        %1125 = vmatpush.msra.mxu0 0.0
        %1126 = vmatpush.msra.mxu0 0.0
        %1127 = vmatpush.msra.mxu0 0.0
        %1128 = vmatpush.msra.mxu0 0.0
        %1129 = vmatpush.msra.mxu0 0.0
        %1130 = vmatpush.msra.mxu0 0.0
        %1131 = vmatpush.msra.mxu0 0.0
        %1132 = vmatpush.msra.mxu0 0.0
        %1133 = vmatpush.msra.mxu0 0.0
        %1134 = vmatpush.msra.mxu0 %v1114
        %1135 = vmatmul.f32.gmra.mxu0 %v1117
        %v1136 = vpop.f32.mrf.mxu0
        %v1137 = vadd.f32 0.0, %v1136
        %1138 = vdwg.mxu0
        %v1139 = vadd.f32 %v1112, %v1137
        %v1140 = vld [vmem:[%s341] sm:$0xff]
        %1142 = vrot.lane.b32.xlu0 %v1114, 127
        %v1143 = vpop.permute.xlu0 %1142
        %v1145 = vsel %vm203, %v1140, 0
        %v1147 = vsel %vm207, %v1143, 0
        %1149 = vmatpush.msra.mxu0 0.0
        %1150 = vmatpush.msra.mxu0 0.0
        %1151 = vmatpush.msra.mxu0 0.0
        %1152 = vmatpush.msra.mxu0 0.0
        %1153 = vmatpush.msra.mxu0 0.0
        %1154 = vmatpush.msra.mxu0 0.0
        %1155 = vmatpush.msra.mxu0 0.0
        %1156 = vmatpush.msra.mxu0 0.0
        %1157 = vmatpush.msra.mxu0 0.0
        %1158 = vmatpush.msra.mxu0 0.0
        %1159 = vmatpush.msra.mxu0 0.0
        %1160 = vmatpush.msra.mxu0 0.0
        %1161 = vmatpush.msra.mxu0 0.0
        %1162 = vmatpush.msra.mxu0 0.0
        %1163 = vmatpush.msra.mxu0 0.0
        %1164 = vmatpush.msra.mxu0 %v1147
        %1165 = vmatmul.f32.gmra.mxu0 %v1145
        %v1166 = vpop.f32.mrf.mxu0
        %v1167 = vadd.f32 0.0, %v1166
        %1168 = vdwg.mxu0
        %v1169 = vadd.f32 %v1139, %v1167
        %v1170 = vadd.f32 %v1169, %v375
        %vm1171 = vcmp.gt.f32.partialorder %v1170, 0.0
        %v1172 = vmin.f32 %v1170, 0.0
        %v1173 = vmul.f32 %v1172, 1.442695
        %v1174 = vpow.pop %v1173
        %v1175 = vsub.f32 %v1174, 1.0
        %v1176 = vsel %vm1171, %v1170, %v1175
        %v1178 = vrot.slane %v1176, 1
        %v1179 = vrot.slane %v1176, 2
        %v1180 = vrot.slane %v1176, 3
        %v1181 = vrot.slane %v1176, 4
        %v1182 = vrot.slane %v1176, 5
        %v1183 = vrot.slane %v1176, 6
        %v1184 = vrot.slane %v1176, 7
        %1192 = vst.msk [vmem:[%s190 + $0x4] sm:$0x1] %vm399, %v1176
        %1193 = vst.msk [vmem:[%s190 + $0xc] sm:$0x1] %vm399, %v1178
        %1194 = vst.msk [vmem:[%s190 + $0x14] sm:$0x1] %vm399, %v1179
        %1195 = vst.msk [vmem:[%s190 + $0x1c] sm:$0x1] %vm399, %v1180
        %1196 = vst.msk [vmem:[%s190 + $0x24] sm:$0x1] %vm399, %v1181
        %1197 = vst.msk [vmem:[%s190 + $0x2c] sm:$0x1] %vm399, %v1182
        %1198 = vst.msk [vmem:[%s190 + $0x34] sm:$0x1] %vm399, %v1183
        %1199 = vst.msk [vmem:[%s190 + $0x3c] sm:$0x1] %vm399, %v1184
        %v1200 = vld [vmem:[%s1113] sm:$0xff]
        %v1201 = vld [vmem:[%s1] sm:$0xff]
        %v1202 = vld [vmem:[%s2] sm:$0xff]
        %1204 = vrot.lane.b32.xlu0 %v1200, 127
        %v1205 = vpop.permute.xlu0 %1204
        %v1207 = vsel %vm203, %v1202, 0
        %v1209 = vsel %vm207, %v1205, 0
        %1211 = vmatpush.msra.mxu0 0.0
        %1212 = vmatpush.msra.mxu0 0.0
        %1213 = vmatpush.msra.mxu0 0.0
        %1214 = vmatpush.msra.mxu0 0.0
        %1215 = vmatpush.msra.mxu0 0.0
        %1216 = vmatpush.msra.mxu0 0.0
        %1217 = vmatpush.msra.mxu0 0.0
        %1218 = vmatpush.msra.mxu0 0.0
        %1219 = vmatpush.msra.mxu0 0.0
        %1220 = vmatpush.msra.mxu0 0.0
        %1221 = vmatpush.msra.mxu0 0.0
        %1222 = vmatpush.msra.mxu0 0.0
        %1223 = vmatpush.msra.mxu0 0.0
        %1224 = vmatpush.msra.mxu0 0.0
        %1225 = vmatpush.msra.mxu0 0.0
        %1226 = vmatpush.msra.mxu0 %v1209
        %1227 = vmatmul.f32.gmra.mxu0 %v1207
        %v1228 = vpop.f32.mrf.mxu0
        %v1229 = vadd.f32 0.0, %v1228
        %1230 = vdwg.mxu0
        %v1232 = vsel %vm230, %v1201, 0
        %1234 = vmatpush.msra.mxu0 0.0
        %1235 = vmatpush.msra.mxu0 0.0
        %1236 = vmatpush.msra.mxu0 0.0
        %1237 = vmatpush.msra.mxu0 0.0
        %1238 = vmatpush.msra.mxu0 0.0
        %1239 = vmatpush.msra.mxu0 0.0
        %1240 = vmatpush.msra.mxu0 0.0
        %1241 = vmatpush.msra.mxu0 0.0
        %1242 = vmatpush.msra.mxu0 0.0
        %1243 = vmatpush.msra.mxu0 0.0
        %1244 = vmatpush.msra.mxu0 0.0
        %1245 = vmatpush.msra.mxu0 0.0
        %1246 = vmatpush.msra.mxu0 0.0
        %1247 = vmatpush.msra.mxu0 0.0
        %1248 = vmatpush.msra.mxu0 0.0
        %1249 = vmatpush.msra.mxu0 %v1200
        %1250 = vmatmul.f32.gmra.mxu0 %v1232
        %v1251 = vpop.f32.mrf.mxu0
        %v1252 = vadd.f32 %v1229, %v1251
        %1253 = vdwg.mxu0
        %s1254 = scalar_lea.vmem %s195, 88
        %v1255 = vld [vmem:[%s1254] sm:$0xff]
        %v1256 = vld [vmem:[%s256] sm:$0xff]
        %v1258 = vsel %vm230, %v1256, 0
        %1260 = vmatpush.msra.mxu0 0.0
        %1261 = vmatpush.msra.mxu0 0.0
        %1262 = vmatpush.msra.mxu0 0.0
        %1263 = vmatpush.msra.mxu0 0.0
        %1264 = vmatpush.msra.mxu0 0.0
        %1265 = vmatpush.msra.mxu0 0.0
        %1266 = vmatpush.msra.mxu0 0.0
        %1267 = vmatpush.msra.mxu0 0.0
        %1268 = vmatpush.msra.mxu0 0.0
        %1269 = vmatpush.msra.mxu0 0.0
        %1270 = vmatpush.msra.mxu0 0.0
        %1271 = vmatpush.msra.mxu0 0.0
        %1272 = vmatpush.msra.mxu0 0.0
        %1273 = vmatpush.msra.mxu0 0.0
        %1274 = vmatpush.msra.mxu0 0.0
        %1275 = vmatpush.msra.mxu0 %v1255
        %1276 = vmatmul.f32.gmra.mxu0 %v1258
        %v1277 = vpop.f32.mrf.mxu0
        %v1278 = vadd.f32 0.0, %v1277
        %1279 = vdwg.mxu0
        %v1280 = vadd.f32 %v1252, %v1278
        %v1281 = vld [vmem:[%s282] sm:$0xff]
        %1283 = vrot.lane.b32.xlu0 %v1255, 127
        %v1284 = vpop.permute.xlu0 %1283
        %v1286 = vsel %vm203, %v1281, 0
        %v1288 = vsel %vm207, %v1284, 0
        %1290 = vmatpush.msra.mxu0 0.0
        %1291 = vmatpush.msra.mxu0 0.0
        %1292 = vmatpush.msra.mxu0 0.0
        %1293 = vmatpush.msra.mxu0 0.0
        %1294 = vmatpush.msra.mxu0 0.0
        %1295 = vmatpush.msra.mxu0 0.0
        %1296 = vmatpush.msra.mxu0 0.0
        %1297 = vmatpush.msra.mxu0 0.0
        %1298 = vmatpush.msra.mxu0 0.0
        %1299 = vmatpush.msra.mxu0 0.0
        %1300 = vmatpush.msra.mxu0 0.0
        %1301 = vmatpush.msra.mxu0 0.0
        %1302 = vmatpush.msra.mxu0 0.0
        %1303 = vmatpush.msra.mxu0 0.0
        %1304 = vmatpush.msra.mxu0 0.0
        %1305 = vmatpush.msra.mxu0 %v1288
        %1306 = vmatmul.f32.gmra.mxu0 %v1286
        %v1307 = vpop.f32.mrf.mxu0
        %v1308 = vadd.f32 0.0, %v1307
        %1309 = vdwg.mxu0
        %v1310 = vadd.f32 %v1280, %v1308
        %s1311 = scalar_lea.vmem %s195, 96
        %v1312 = vld [vmem:[%s1311] sm:$0xff]
        %v1313 = vld [vmem:[%s315] sm:$0xff]
        %v1315 = vsel %vm230, %v1313, 0
        %1317 = vmatpush.msra.mxu0 0.0
        %1318 = vmatpush.msra.mxu0 0.0
        %1319 = vmatpush.msra.mxu0 0.0
        %1320 = vmatpush.msra.mxu0 0.0
        %1321 = vmatpush.msra.mxu0 0.0
        %1322 = vmatpush.msra.mxu0 0.0
        %1323 = vmatpush.msra.mxu0 0.0
        %1324 = vmatpush.msra.mxu0 0.0
        %1325 = vmatpush.msra.mxu0 0.0
        %1326 = vmatpush.msra.mxu0 0.0
        %1327 = vmatpush.msra.mxu0 0.0
        %1328 = vmatpush.msra.mxu0 0.0
        %1329 = vmatpush.msra.mxu0 0.0
        %1330 = vmatpush.msra.mxu0 0.0
        %1331 = vmatpush.msra.mxu0 0.0
        %1332 = vmatpush.msra.mxu0 %v1312
        %1333 = vmatmul.f32.gmra.mxu0 %v1315
        %v1334 = vpop.f32.mrf.mxu0
        %v1335 = vadd.f32 0.0, %v1334
        %1336 = vdwg.mxu0
        %v1337 = vadd.f32 %v1310, %v1335
        %v1338 = vld [vmem:[%s341] sm:$0xff]
        %1340 = vrot.lane.b32.xlu0 %v1312, 127
        %v1341 = vpop.permute.xlu0 %1340
        %v1343 = vsel %vm203, %v1338, 0
        %v1345 = vsel %vm207, %v1341, 0
        %1347 = vmatpush.msra.mxu0 0.0
        %1348 = vmatpush.msra.mxu0 0.0
        %1349 = vmatpush.msra.mxu0 0.0
        %1350 = vmatpush.msra.mxu0 0.0
        %1351 = vmatpush.msra.mxu0 0.0
        %1352 = vmatpush.msra.mxu0 0.0
        %1353 = vmatpush.msra.mxu0 0.0
        %1354 = vmatpush.msra.mxu0 0.0
        %1355 = vmatpush.msra.mxu0 0.0
        %1356 = vmatpush.msra.mxu0 0.0
        %1357 = vmatpush.msra.mxu0 0.0
        %1358 = vmatpush.msra.mxu0 0.0
        %1359 = vmatpush.msra.mxu0 0.0
        %1360 = vmatpush.msra.mxu0 0.0
        %1361 = vmatpush.msra.mxu0 0.0
        %1362 = vmatpush.msra.mxu0 %v1345
        %1363 = vmatmul.f32.gmra.mxu0 %v1343
        %v1364 = vpop.f32.mrf.mxu0
        %v1365 = vadd.f32 0.0, %v1364
        %1366 = vdwg.mxu0
        %v1367 = vadd.f32 %v1337, %v1365
        %v1368 = vadd.f32 %v1367, %v375
        %vm1369 = vcmp.gt.f32.partialorder %v1368, 0.0
        %v1370 = vmin.f32 %v1368, 0.0
        %v1371 = vmul.f32 %v1370, 1.442695
        %v1372 = vpow.pop %v1371
        %v1373 = vsub.f32 %v1372, 1.0
        %v1374 = vsel %vm1369, %v1368, %v1373
        %v1376 = vrot.slane %v1374, 1
        %v1377 = vrot.slane %v1374, 2
        %v1378 = vrot.slane %v1374, 3
        %v1379 = vrot.slane %v1374, 4
        %v1380 = vrot.slane %v1374, 5
        %v1381 = vrot.slane %v1374, 6
        %v1382 = vrot.slane %v1374, 7
        %1390 = vst.msk [vmem:[%s190 + $0x5] sm:$0x1] %vm399, %v1374
        %1391 = vst.msk [vmem:[%s190 + $0xd] sm:$0x1] %vm399, %v1376
        %1392 = vst.msk [vmem:[%s190 + $0x15] sm:$0x1] %vm399, %v1377
        %1393 = vst.msk [vmem:[%s190 + $0x1d] sm:$0x1] %vm399, %v1378
        %1394 = vst.msk [vmem:[%s190 + $0x25] sm:$0x1] %vm399, %v1379
        %1395 = vst.msk [vmem:[%s190 + $0x2d] sm:$0x1] %vm399, %v1380
        %1396 = vst.msk [vmem:[%s190 + $0x35] sm:$0x1] %vm399, %v1381
        %1397 = vst.msk [vmem:[%s190 + $0x3d] sm:$0x1] %vm399, %v1382
        %v1398 = vld [vmem:[%s1311] sm:$0xff]
        %v1399 = vld [vmem:[%s1] sm:$0xff]
        %v1400 = vld [vmem:[%s2] sm:$0xff]
        %1402 = vrot.lane.b32.xlu0 %v1398, 127
        %v1403 = vpop.permute.xlu0 %1402
        %v1405 = vsel %vm203, %v1400, 0
        %v1407 = vsel %vm207, %v1403, 0
        %1409 = vmatpush.msra.mxu0 0.0
        %1410 = vmatpush.msra.mxu0 0.0
        %1411 = vmatpush.msra.mxu0 0.0
        %1412 = vmatpush.msra.mxu0 0.0
        %1413 = vmatpush.msra.mxu0 0.0
        %1414 = vmatpush.msra.mxu0 0.0
        %1415 = vmatpush.msra.mxu0 0.0
        %1416 = vmatpush.msra.mxu0 0.0
        %1417 = vmatpush.msra.mxu0 0.0
        %1418 = vmatpush.msra.mxu0 0.0
        %1419 = vmatpush.msra.mxu0 0.0
        %1420 = vmatpush.msra.mxu0 0.0
        %1421 = vmatpush.msra.mxu0 0.0
        %1422 = vmatpush.msra.mxu0 0.0
        %1423 = vmatpush.msra.mxu0 0.0
        %1424 = vmatpush.msra.mxu0 %v1407
        %1425 = vmatmul.f32.gmra.mxu0 %v1405
        %v1426 = vpop.f32.mrf.mxu0
        %v1427 = vadd.f32 0.0, %v1426
        %1428 = vdwg.mxu0
        %v1430 = vsel %vm230, %v1399, 0
        %1432 = vmatpush.msra.mxu0 0.0
        %1433 = vmatpush.msra.mxu0 0.0
        %1434 = vmatpush.msra.mxu0 0.0
        %1435 = vmatpush.msra.mxu0 0.0
        %1436 = vmatpush.msra.mxu0 0.0
        %1437 = vmatpush.msra.mxu0 0.0
        %1438 = vmatpush.msra.mxu0 0.0
        %1439 = vmatpush.msra.mxu0 0.0
        %1440 = vmatpush.msra.mxu0 0.0
        %1441 = vmatpush.msra.mxu0 0.0
        %1442 = vmatpush.msra.mxu0 0.0
        %1443 = vmatpush.msra.mxu0 0.0
        %1444 = vmatpush.msra.mxu0 0.0
        %1445 = vmatpush.msra.mxu0 0.0
        %1446 = vmatpush.msra.mxu0 0.0
        %1447 = vmatpush.msra.mxu0 %v1398
        %1448 = vmatmul.f32.gmra.mxu0 %v1430
        %v1449 = vpop.f32.mrf.mxu0
        %v1450 = vadd.f32 %v1427, %v1449
        %1451 = vdwg.mxu0
        %s1452 = scalar_lea.vmem %s195, 104
        %v1453 = vld [vmem:[%s1452] sm:$0xff]
        %v1454 = vld [vmem:[%s256] sm:$0xff]
        %v1456 = vsel %vm230, %v1454, 0
        %1458 = vmatpush.msra.mxu0 0.0
        %1459 = vmatpush.msra.mxu0 0.0
        %1460 = vmatpush.msra.mxu0 0.0
        %1461 = vmatpush.msra.mxu0 0.0
        %1462 = vmatpush.msra.mxu0 0.0
        %1463 = vmatpush.msra.mxu0 0.0
        %1464 = vmatpush.msra.mxu0 0.0
        %1465 = vmatpush.msra.mxu0 0.0
        %1466 = vmatpush.msra.mxu0 0.0
        %1467 = vmatpush.msra.mxu0 0.0
        %1468 = vmatpush.msra.mxu0 0.0
        %1469 = vmatpush.msra.mxu0 0.0
        %1470 = vmatpush.msra.mxu0 0.0
        %1471 = vmatpush.msra.mxu0 0.0
        %1472 = vmatpush.msra.mxu0 0.0
        %1473 = vmatpush.msra.mxu0 %v1453
        %1474 = vmatmul.f32.gmra.mxu0 %v1456
        %v1475 = vpop.f32.mrf.mxu0
        %v1476 = vadd.f32 0.0, %v1475
        %1477 = vdwg.mxu0
        %v1478 = vadd.f32 %v1450, %v1476
        %v1479 = vld [vmem:[%s282] sm:$0xff]
        %1481 = vrot.lane.b32.xlu0 %v1453, 127
        %v1482 = vpop.permute.xlu0 %1481
        %v1484 = vsel %vm203, %v1479, 0
        %v1486 = vsel %vm207, %v1482, 0
        %1488 = vmatpush.msra.mxu0 0.0
        %1489 = vmatpush.msra.mxu0 0.0
        %1490 = vmatpush.msra.mxu0 0.0
        %1491 = vmatpush.msra.mxu0 0.0
        %1492 = vmatpush.msra.mxu0 0.0
        %1493 = vmatpush.msra.mxu0 0.0
        %1494 = vmatpush.msra.mxu0 0.0
        %1495 = vmatpush.msra.mxu0 0.0
        %1496 = vmatpush.msra.mxu0 0.0
        %1497 = vmatpush.msra.mxu0 0.0
        %1498 = vmatpush.msra.mxu0 0.0
        %1499 = vmatpush.msra.mxu0 0.0
        %1500 = vmatpush.msra.mxu0 0.0
        %1501 = vmatpush.msra.mxu0 0.0
        %1502 = vmatpush.msra.mxu0 0.0
        %1503 = vmatpush.msra.mxu0 %v1486
        %1504 = vmatmul.f32.gmra.mxu0 %v1484
        %v1505 = vpop.f32.mrf.mxu0
        %v1506 = vadd.f32 0.0, %v1505
        %1507 = vdwg.mxu0
        %v1508 = vadd.f32 %v1478, %v1506
        %s1509 = scalar_lea.vmem %s195, 112
        %v1510 = vld [vmem:[%s1509] sm:$0xff]
        %v1511 = vld [vmem:[%s315] sm:$0xff]
        %v1513 = vsel %vm230, %v1511, 0
        %1515 = vmatpush.msra.mxu0 0.0
        %1516 = vmatpush.msra.mxu0 0.0
        %1517 = vmatpush.msra.mxu0 0.0
        %1518 = vmatpush.msra.mxu0 0.0
        %1519 = vmatpush.msra.mxu0 0.0
        %1520 = vmatpush.msra.mxu0 0.0
        %1521 = vmatpush.msra.mxu0 0.0
        %1522 = vmatpush.msra.mxu0 0.0
        %1523 = vmatpush.msra.mxu0 0.0
        %1524 = vmatpush.msra.mxu0 0.0
        %1525 = vmatpush.msra.mxu0 0.0
        %1526 = vmatpush.msra.mxu0 0.0
        %1527 = vmatpush.msra.mxu0 0.0
        %1528 = vmatpush.msra.mxu0 0.0
        %1529 = vmatpush.msra.mxu0 0.0
        %1530 = vmatpush.msra.mxu0 %v1510
        %1531 = vmatmul.f32.gmra.mxu0 %v1513
        %v1532 = vpop.f32.mrf.mxu0
        %v1533 = vadd.f32 0.0, %v1532
        %1534 = vdwg.mxu0
        %v1535 = vadd.f32 %v1508, %v1533
        %v1536 = vld [vmem:[%s341] sm:$0xff]
        %1538 = vrot.lane.b32.xlu0 %v1510, 127
        %v1539 = vpop.permute.xlu0 %1538
        %v1541 = vsel %vm203, %v1536, 0
        %v1543 = vsel %vm207, %v1539, 0
        %1545 = vmatpush.msra.mxu0 0.0
        %1546 = vmatpush.msra.mxu0 0.0
        %1547 = vmatpush.msra.mxu0 0.0
        %1548 = vmatpush.msra.mxu0 0.0
        %1549 = vmatpush.msra.mxu0 0.0
        %1550 = vmatpush.msra.mxu0 0.0
        %1551 = vmatpush.msra.mxu0 0.0
        %1552 = vmatpush.msra.mxu0 0.0
        %1553 = vmatpush.msra.mxu0 0.0
        %1554 = vmatpush.msra.mxu0 0.0
        %1555 = vmatpush.msra.mxu0 0.0
        %1556 = vmatpush.msra.mxu0 0.0
        %1557 = vmatpush.msra.mxu0 0.0
        %1558 = vmatpush.msra.mxu0 0.0
        %1559 = vmatpush.msra.mxu0 0.0
        %1560 = vmatpush.msra.mxu0 %v1543
        %1561 = vmatmul.f32.gmra.mxu0 %v1541
        %v1562 = vpop.f32.mrf.mxu0
        %v1563 = vadd.f32 0.0, %v1562
        %1564 = vdwg.mxu0
        %v1565 = vadd.f32 %v1535, %v1563
        %v1566 = vadd.f32 %v1565, %v375
        %vm1567 = vcmp.gt.f32.partialorder %v1566, 0.0
        %v1568 = vmin.f32 %v1566, 0.0
        %v1569 = vmul.f32 %v1568, 1.442695
        %v1570 = vpow.pop %v1569
        %v1571 = vsub.f32 %v1570, 1.0
        %v1572 = vsel %vm1567, %v1566, %v1571
        %v1574 = vrot.slane %v1572, 1
        %v1575 = vrot.slane %v1572, 2
        %v1576 = vrot.slane %v1572, 3
        %v1577 = vrot.slane %v1572, 4
        %v1578 = vrot.slane %v1572, 5
        %v1579 = vrot.slane %v1572, 6
        %v1580 = vrot.slane %v1572, 7
        %1588 = vst.msk [vmem:[%s190 + $0x6] sm:$0x1] %vm399, %v1572
        %1589 = vst.msk [vmem:[%s190 + $0xe] sm:$0x1] %vm399, %v1574
        %1590 = vst.msk [vmem:[%s190 + $0x16] sm:$0x1] %vm399, %v1575
        %1591 = vst.msk [vmem:[%s190 + $0x1e] sm:$0x1] %vm399, %v1576
        %1592 = vst.msk [vmem:[%s190 + $0x26] sm:$0x1] %vm399, %v1577
        %1593 = vst.msk [vmem:[%s190 + $0x2e] sm:$0x1] %vm399, %v1578
        %1594 = vst.msk [vmem:[%s190 + $0x36] sm:$0x1] %vm399, %v1579
        %1595 = vst.msk [vmem:[%s190 + $0x3e] sm:$0x1] %vm399, %v1580
        %v1596 = vld [vmem:[%s1509] sm:$0xff]
        %v1597 = vld [vmem:[%s1] sm:$0xff]
        %v1598 = vld [vmem:[%s2] sm:$0xff]
        %1600 = vrot.lane.b32.xlu0 %v1596, 127
        %v1601 = vpop.permute.xlu0 %1600
        %v1603 = vsel %vm203, %v1598, 0
        %v1605 = vsel %vm207, %v1601, 0
        %1607 = vmatpush.msra.mxu0 0.0
        %1608 = vmatpush.msra.mxu0 0.0
        %1609 = vmatpush.msra.mxu0 0.0
        %1610 = vmatpush.msra.mxu0 0.0
        %1611 = vmatpush.msra.mxu0 0.0
        %1612 = vmatpush.msra.mxu0 0.0
        %1613 = vmatpush.msra.mxu0 0.0
        %1614 = vmatpush.msra.mxu0 0.0
        %1615 = vmatpush.msra.mxu0 0.0
        %1616 = vmatpush.msra.mxu0 0.0
        %1617 = vmatpush.msra.mxu0 0.0
        %1618 = vmatpush.msra.mxu0 0.0
        %1619 = vmatpush.msra.mxu0 0.0
        %1620 = vmatpush.msra.mxu0 0.0
        %1621 = vmatpush.msra.mxu0 0.0
        %1622 = vmatpush.msra.mxu0 %v1605
        %1623 = vmatmul.f32.gmra.mxu0 %v1603
        %v1624 = vpop.f32.mrf.mxu0
        %v1625 = vadd.f32 0.0, %v1624
        %1626 = vdwg.mxu0
        %v1628 = vsel %vm230, %v1597, 0
        %1630 = vmatpush.msra.mxu0 0.0
        %1631 = vmatpush.msra.mxu0 0.0
        %1632 = vmatpush.msra.mxu0 0.0
        %1633 = vmatpush.msra.mxu0 0.0
        %1634 = vmatpush.msra.mxu0 0.0
        %1635 = vmatpush.msra.mxu0 0.0
        %1636 = vmatpush.msra.mxu0 0.0
        %1637 = vmatpush.msra.mxu0 0.0
        %1638 = vmatpush.msra.mxu0 0.0
        %1639 = vmatpush.msra.mxu0 0.0
        %1640 = vmatpush.msra.mxu0 0.0
        %1641 = vmatpush.msra.mxu0 0.0
        %1642 = vmatpush.msra.mxu0 0.0
        %1643 = vmatpush.msra.mxu0 0.0
        %1644 = vmatpush.msra.mxu0 0.0
        %1645 = vmatpush.msra.mxu0 %v1596
        %1646 = vmatmul.f32.gmra.mxu0 %v1628
        %v1647 = vpop.f32.mrf.mxu0
        %v1648 = vadd.f32 %v1625, %v1647
        %1649 = vdwg.mxu0
        %s1650 = scalar_lea.vmem %s195, 120
        %v1651 = vld [vmem:[%s1650] sm:$0xff]
        %v1652 = vld [vmem:[%s256] sm:$0xff]
        %v1654 = vsel %vm230, %v1652, 0
        %1656 = vmatpush.msra.mxu0 0.0
        %1657 = vmatpush.msra.mxu0 0.0
        %1658 = vmatpush.msra.mxu0 0.0
        %1659 = vmatpush.msra.mxu0 0.0
        %1660 = vmatpush.msra.mxu0 0.0
        %1661 = vmatpush.msra.mxu0 0.0
        %1662 = vmatpush.msra.mxu0 0.0
        %1663 = vmatpush.msra.mxu0 0.0
        %1664 = vmatpush.msra.mxu0 0.0
        %1665 = vmatpush.msra.mxu0 0.0
        %1666 = vmatpush.msra.mxu0 0.0
        %1667 = vmatpush.msra.mxu0 0.0
        %1668 = vmatpush.msra.mxu0 0.0
        %1669 = vmatpush.msra.mxu0 0.0
        %1670 = vmatpush.msra.mxu0 0.0
        %1671 = vmatpush.msra.mxu0 %v1651
        %1672 = vmatmul.f32.gmra.mxu0 %v1654
        %v1673 = vpop.f32.mrf.mxu0
        %v1674 = vadd.f32 0.0, %v1673
        %1675 = vdwg.mxu0
        %v1676 = vadd.f32 %v1648, %v1674
        %v1677 = vld [vmem:[%s282] sm:$0xff]
        %1679 = vrot.lane.b32.xlu0 %v1651, 127
        %v1680 = vpop.permute.xlu0 %1679
        %v1682 = vsel %vm203, %v1677, 0
        %v1684 = vsel %vm207, %v1680, 0
        %1686 = vmatpush.msra.mxu0 0.0
        %1687 = vmatpush.msra.mxu0 0.0
        %1688 = vmatpush.msra.mxu0 0.0
        %1689 = vmatpush.msra.mxu0 0.0
        %1690 = vmatpush.msra.mxu0 0.0
        %1691 = vmatpush.msra.mxu0 0.0
        %1692 = vmatpush.msra.mxu0 0.0
        %1693 = vmatpush.msra.mxu0 0.0
        %1694 = vmatpush.msra.mxu0 0.0
        %1695 = vmatpush.msra.mxu0 0.0
        %1696 = vmatpush.msra.mxu0 0.0
        %1697 = vmatpush.msra.mxu0 0.0
        %1698 = vmatpush.msra.mxu0 0.0
        %1699 = vmatpush.msra.mxu0 0.0
        %1700 = vmatpush.msra.mxu0 0.0
        %1701 = vmatpush.msra.mxu0 %v1684
        %1702 = vmatmul.f32.gmra.mxu0 %v1682
        %v1703 = vpop.f32.mrf.mxu0
        %v1704 = vadd.f32 0.0, %v1703
        %1705 = vdwg.mxu0
        %v1706 = vadd.f32 %v1676, %v1704
        %s1707 = scalar_lea.vmem %s195, 128
        %v1708 = vld [vmem:[%s1707] sm:$0xff]
        %v1709 = vld [vmem:[%s315] sm:$0xff]
        %v1711 = vsel %vm230, %v1709, 0
        %1713 = vmatpush.msra.mxu0 0.0
        %1714 = vmatpush.msra.mxu0 0.0
        %1715 = vmatpush.msra.mxu0 0.0
        %1716 = vmatpush.msra.mxu0 0.0
        %1717 = vmatpush.msra.mxu0 0.0
        %1718 = vmatpush.msra.mxu0 0.0
        %1719 = vmatpush.msra.mxu0 0.0
        %1720 = vmatpush.msra.mxu0 0.0
        %1721 = vmatpush.msra.mxu0 0.0
        %1722 = vmatpush.msra.mxu0 0.0
        %1723 = vmatpush.msra.mxu0 0.0
        %1724 = vmatpush.msra.mxu0 0.0
        %1725 = vmatpush.msra.mxu0 0.0
        %1726 = vmatpush.msra.mxu0 0.0
        %1727 = vmatpush.msra.mxu0 0.0
        %1728 = vmatpush.msra.mxu0 %v1708
        %1729 = vmatmul.f32.gmra.mxu0 %v1711
        %v1730 = vpop.f32.mrf.mxu0
        %v1731 = vadd.f32 0.0, %v1730
        %1732 = vdwg.mxu0
        %v1733 = vadd.f32 %v1706, %v1731
        %v1734 = vld [vmem:[%s341] sm:$0xff]
        %1736 = vrot.lane.b32.xlu0 %v1708, 127
        %v1737 = vpop.permute.xlu0 %1736
        %v1739 = vsel %vm203, %v1734, 0
        %v1741 = vsel %vm207, %v1737, 0
        %1743 = vmatpush.msra.mxu0 0.0
        %1744 = vmatpush.msra.mxu0 0.0
        %1745 = vmatpush.msra.mxu0 0.0
        %1746 = vmatpush.msra.mxu0 0.0
        %1747 = vmatpush.msra.mxu0 0.0
        %1748 = vmatpush.msra.mxu0 0.0
        %1749 = vmatpush.msra.mxu0 0.0
        %1750 = vmatpush.msra.mxu0 0.0
        %1751 = vmatpush.msra.mxu0 0.0
        %1752 = vmatpush.msra.mxu0 0.0
        %1753 = vmatpush.msra.mxu0 0.0
        %1754 = vmatpush.msra.mxu0 0.0
        %1755 = vmatpush.msra.mxu0 0.0
        %1756 = vmatpush.msra.mxu0 0.0
        %1757 = vmatpush.msra.mxu0 0.0
        %1758 = vmatpush.msra.mxu0 %v1741
        %1759 = vmatmul.f32.gmra.mxu0 %v1739
        %v1760 = vpop.f32.mrf.mxu0
        %v1761 = vadd.f32 0.0, %v1760
        %1762 = vdwg.mxu0
        %v1763 = vadd.f32 %v1733, %v1761
        %v1764 = vadd.f32 %v1763, %v375
        %vm1765 = vcmp.gt.f32.partialorder %v1764, 0.0
        %v1766 = vmin.f32 %v1764, 0.0
        %v1767 = vmul.f32 %v1766, 1.442695
        %v1768 = vpow.pop %v1767
        %v1769 = vsub.f32 %v1768, 1.0
        %v1770 = vsel %vm1765, %v1764, %v1769
        %v1772 = vrot.slane %v1770, 1
        %v1773 = vrot.slane %v1770, 2
        %v1774 = vrot.slane %v1770, 3
        %v1775 = vrot.slane %v1770, 4
        %v1776 = vrot.slane %v1770, 5
        %v1777 = vrot.slane %v1770, 6
        %v1778 = vrot.slane %v1770, 7
        %1786 = vst.msk [vmem:[%s190 + $0x7] sm:$0x1] %vm399, %v1770
        %1787 = vst.msk [vmem:[%s190 + $0xf] sm:$0x1] %vm399, %v1772
        %1788 = vst.msk [vmem:[%s190 + $0x17] sm:$0x1] %vm399, %v1773
        %1789 = vst.msk [vmem:[%s190 + $0x1f] sm:$0x1] %vm399, %v1774
        %1790 = vst.msk [vmem:[%s190 + $0x27] sm:$0x1] %vm399, %v1775
        %1791 = vst.msk [vmem:[%s190 + $0x2f] sm:$0x1] %vm399, %v1776
        %1792 = vst.msk [vmem:[%s190 + $0x37] sm:$0x1] %vm399, %v1777
        %1793 = vst.msk [vmem:[%s190 + $0x3f] sm:$0x1] %vm399, %v1778
        %s1794 = sand.u32 %s115, 1
        %s1795 = scalar_lea.sflag [#allocation3], %s1794
        %s1796 = sand.u32 %s115, 1
        %s1797 = smul.addr %s1796, 64
        %s1798 = scalar_lea.vmem [#allocation2], %s1797
        // Predicated region
        $region37: #{tpu_custom_call.1} parent=35 // pred_check
          %p1799 = pneg %p125
        $region38: #{tpu_custom_call.1} parent=35 // pred_check_branch
          %1801 = sbr.rel (%p1799) target = $region40
        $region39: #{tpu_custom_call.1} parent=35 // pred_region
          %1803 = vsyncadd %s1795, 0
          %s1804 = smul.addr %s18, 8
          %s1805 = smul.addr %s1804, 8
          %s1806 = scalar_lea.hbm %s4, %s1805
          %s1807 = sshll.u32 %s1798, 4
          %s1808 = int_to_ptr.vmem [resolvable:$true] %s1807
          %s1809 = sshll.u32 %s1806, 4
          %s1810 = int_to_ptr.hbm [resolvable:$true] %s1809
          %1815 = dma.vmem_to_hbm [thread:$0]  %s1808, 1024, %s1810, %s1795, 128, 128, 8
        $region40: #{tpu_custom_call.1} parent=35 // pred_fallthru
          _
      $region36: #{tpu_custom_call.1} parent=5 // pred_fallthru
        _
      %p1816 = scmp.le.s32.totalorder 2, %s13
      // Predicated region
      $region41: #{tpu_custom_call.1} parent=5 // pred_check
        %p1817 = pneg %p1816
      $region42: #{tpu_custom_call.1} parent=5 // pred_check_branch
        %1819 = sbr.rel (%p1817) target = $region44
      $region43: #{tpu_custom_call.1} parent=5 // pred_region
        %s1820 = ssub.s32 %s13, 2
        // Predicated region
        $region45: #{tpu_custom_call.1} parent=43 // pred_check
          %p1821 = pneg %p131
        $region46: #{tpu_custom_call.1} parent=43 // pred_check_branch
          %1823 = sbr.rel (%p1821) target = $region48
        $region47: #{tpu_custom_call.1} parent=43 // pred_region
          %s1824 = sand.u32 %s116, 1
          %s1825 = scalar_lea.sflag [#allocation3], %s1824
          %s1826 = sand.u32 %s116, 1
          %s1827 = smul.addr %s1826, 64
          %s1828 = scalar_lea.vmem [#allocation2], %s1827
          %1830 = dma.done %s1825, 1024
        $region48: #{tpu_custom_call.1} parent=43 // pred_fallthru
          _
      $region44: #{tpu_custom_call.1} parent=5 // pred_fallthru
        _
    $region6: #{tpu_custom_call.1} parent=1 // loop_footer
      %s17 = sadd.s32 1, %s13
    $region7: #{tpu_custom_call.1} parent=1 // loop_footer_branch
      %12 = sbr.rel target = $region3
    $region8: #{tpu_custom_call.1} parent=1 // loop_exit
      _
    %1831 = vsyncpa [#allocation3], 1
    %s1832 = scalar_lea.sflag [#allocation3], 1
    %1833 = vsyncpa %s1832, 1

</llo_original>
